<compile_context>
chip_gen: v7x
topology: tpu7x:2x2x1
jax: 0.10.0
libtpu: 0.0.40
codegen_flags: <defaults>
</compile_context>

<pallas_src>
import math

import jax
import jax.numpy as jnp
from jax.experimental import pallas as pl
from jax.experimental.pallas import tpu as pltpu

# ---- synthetic encoder dims (small, consistent with a ViT backbone) ----
PATCH = 8
C_IN = 3
IMG = 16
D = 32                       # hidden size
HEADS = 4
HD = D // HEADS              # head dim
MLP = 4 * D                  # MLP hidden
P = (IMG // PATCH) ** 2      # number of patches per image = 4
S = P + 1                    # sequence length incl. CLS = 5
PD = C_IN * PATCH * PATCH    # patch dim = 192
LN_EPS = 1e-6

WIDE = P * D                 # 128: per-image lane layout (4 tokens side by side)
XW = P * PD                  # 768: flattened patch pixels per image
PH = P * HEADS               # 16: per-image (patch, head) score lanes

# ---- packed-slab row offsets (must match _pack_params) ----
_W_PE, _W_M1, _W_WV = 0, XW, XW + WIDE            # bf16 slab (width 128)
W_ROWS = XW + 2 * WIDE                            # 1024

_A_PPICK, _A_WM1 = 0, PH                          # f32 slab (width 128)
_A_ADD, _A_G1, _A_B1, _A_BV, _A_BM1 = PH + D, PH + D + 1, PH + D + 2, PH + D + 3, PH + D + 4
A_ROWS = PH + D + 5                               # 53

_B_FOLD, _B_CPICK, _B_WO, _B_WM2 = 0, WIDE, WIDE + PH, WIDE + PH + D   # f32 slab (width 32)
_B_CLS = WIDE + PH + D + MLP                      # 304
_B_BO, _B_VCLS, _B_G2, _B_BE2 = _B_CLS + 1, _B_CLS + 2, _B_CLS + 3, _B_CLS + 4
_B_BM2, _B_GF, _B_BEF = _B_CLS + 5, _B_CLS + 6, _B_CLS + 7
B_ROWS = _B_CLS + 8                               # 312

_C_WKS, _C_SUM, _C_BSREL = 0, WIDE, WIDE + PH     # f32 slab (width 16)
C_ROWS = WIDE + PH + 1                            # 145


def vit_cls_kernel(x_ref, w_ref, a_ref, b_ref, c_ref, out_ref):
    f32 = jnp.float32
    bf16 = jnp.bfloat16

    def layer_norm(v, g, b):
        mu = jnp.mean(v, axis=-1, keepdims=True)
        var = jnp.mean((v - mu) ** 2, axis=-1, keepdims=True)
        return (v - mu) * jax.lax.rsqrt(var + LN_EPS) * g + b

    # --- unpack constant slabs (static slices) ---
    wpe = w_ref[_W_PE:_W_PE + XW, :]            # (768, 128) bf16 block-diag patch embed
    m1 = w_ref[_W_M1:_W_M1 + WIDE, :]           # (128, 128) bf16 segment-mean matrix
    wv_big = w_ref[_W_WV:_W_WV + WIDE, :]       # (128, 128) bf16 block-diag V projection

    ppick = a_ref[_A_PPICK:_A_PPICK + PH, :]    # (16, 128) head-prob -> value lanes
    wm1 = a_ref[_A_WM1:_A_WM1 + D, :]           # (32, 128) MLP in
    add_w = a_ref[_A_ADD:_A_ADD + 1, :]         # (1, 128) pos + patch bias
    g1_w = a_ref[_A_G1:_A_G1 + 1, :]
    b1_w = a_ref[_A_B1:_A_B1 + 1, :]
    bv_w = a_ref[_A_BV:_A_BV + 1, :]
    bm1 = a_ref[_A_BM1:_A_BM1 + 1, :]

    fold = b_ref[_B_FOLD:_B_FOLD + WIDE, :]     # (128, 32) sum over patches
    cpick = b_ref[_B_CPICK:_B_CPICK + PH, :]    # (16, 32) per-head -> lanes (CLS key)
    wo = b_ref[_B_WO:_B_WO + D, :]              # (32, 32)
    wm2 = b_ref[_B_WM2:_B_WM2 + MLP, :]         # (128, 32)
    cls_row = b_ref[_B_CLS:_B_CLS + 1, :]
    bo = b_ref[_B_BO:_B_BO + 1, :]
    v_cls = b_ref[_B_VCLS:_B_VCLS + 1, :]
    g2 = b_ref[_B_G2:_B_G2 + 1, :]
    be2 = b_ref[_B_BE2:_B_BE2 + 1, :]
    bm2 = b_ref[_B_BM2:_B_BM2 + 1, :]
    gf = b_ref[_B_GF:_B_GF + 1, :]
    bef = b_ref[_B_BEF:_B_BEF + 1, :]

    wks = c_ref[_C_WKS:_C_WKS + WIDE, :]        # (128, 16) folded CLS-query score weight
    sum_head = c_ref[_C_SUM:_C_SUM + PH, :]     # (16, 16) sum over patches per head
    bs_rel = c_ref[_C_BSREL:_C_BSREL + 1, :]    # (1, 16) score bias relative to CLS key

    # --- patch embedding for the whole tile: bf16 operands, f32 accumulation ---
    pe = jnp.dot(x_ref[...], wpe, preferred_element_type=f32)           # (TB, 128)
    toks = pe + add_w                                                    # +pos +patch bias

    # --- per-token LayerNorm in the 4-tokens-per-row layout (segment mean via matmul) ---
    mu = jnp.dot(toks.astype(bf16), m1, preferred_element_type=f32)
    cen = toks - mu
    var = jnp.dot((cen * cen).astype(bf16), m1, preferred_element_type=f32)
    xn = cen * jax.lax.rsqrt(var + LN_EPS) * g1_w + b1_w                 # (TB, 128)

    # --- CLS-query attention (query folded into wks; CLS key/value are constants) ---
    e = jnp.exp(jnp.dot(xn, wks, preferred_element_type=f32) + bs_rel)   # (TB, 16)
    inv_z = 1.0 / (jnp.dot(e, sum_head, preferred_element_type=f32) + 1.0)
    v = jnp.dot(xn.astype(bf16), wv_big, preferred_element_type=f32) + bv_w   # (TB, 128)
    probs = jnp.dot(e * inv_z, ppick, preferred_element_type=f32)        # (TB, 128)
    ctx = (jnp.dot(probs * v, fold, preferred_element_type=f32)
           + jnp.dot(inv_z, cpick, preferred_element_type=f32) * v_cls)  # (TB, 32)
    cls_stream = cls_row + jnp.dot(ctx, wo, preferred_element_type=f32) + bo

    # --- MLP block + final LayerNorm on the CLS rows only ---
    xn2 = layer_norm(cls_stream, g2, be2)
    h1 = jax.nn.gelu(jnp.dot(xn2, wm1, preferred_element_type=f32) + bm1,
                     approximate=True)
    h2 = jnp.dot(h1, wm2, preferred_element_type=f32) + bm2
    out_ref[...] = layer_norm(cls_stream + h2, gf, bef)                  # (TB, 32)


def make_params(key):
    ks = jax.random.split(key, 16)

    def nrm(k, shape):
        return (0.02 * jax.random.normal(k, shape)).astype(jnp.float32)

    return {
        "wp": nrm(ks[0], (PD, D)),
        "bp": jnp.zeros((1, D), jnp.float32),
        "cls": nrm(ks[1], (1, D)),
        "pos": nrm(ks[2], (S, D)),
        "g1": jnp.ones((1, D), jnp.float32),
        "be1": jnp.zeros((1, D), jnp.float32),
        "wq": nrm(ks[3], (D, D)),
        "bq": jnp.zeros((1, D), jnp.float32),
        "wk": nrm(ks[4], (D, D)),
        "bk": jnp.zeros((1, D), jnp.float32),
        "wv": nrm(ks[5], (D, D)),
        "bv": jnp.zeros((1, D), jnp.float32),
        "wo": nrm(ks[6], (D, D)),
        "bo": jnp.zeros((1, D), jnp.float32),
        "g2": jnp.ones((1, D), jnp.float32),
        "be2": jnp.zeros((1, D), jnp.float32),
        "wm1": nrm(ks[7], (D, MLP)),
        "bm1": jnp.zeros((1, MLP), jnp.float32),
        "wm2": nrm(ks[8], (MLP, D)),
        "bm2": jnp.zeros((1, D), jnp.float32),
        "gf": jnp.ones((1, D), jnp.float32),
        "bef": jnp.zeros((1, D), jnp.float32),
    }


def _patchify(images):
    """NCHW float32 [B, 3, 16, 16] -> [B, P, C*ph*pw] (matches a stride=patch conv)."""
    B = images.shape[0]
    x = images.reshape(B, C_IN, IMG // PATCH, PATCH, IMG // PATCH, PATCH)
    x = x.transpose(0, 2, 4, 1, 3, 5).reshape(B, P, PD)
    return x.astype(jnp.float32)


def _pack_params(params):
    """Fold / widen the encoder parameters into the four kernel slabs."""
    scale = 1.0 / math.sqrt(HD)

    def ln(v, g, b):
        mu = jnp.mean(v, -1, keepdims=True)
        var = jnp.mean((v - mu) ** 2, -1, keepdims=True)
        return (v - mu) * jax.lax.rsqrt(var + LN_EPS) * g + b

    eye_p = jnp.eye(P, dtype=jnp.float32)

    def bdiag(m):                      # per-patch block -> P-fold block diagonal
        return jnp.kron(eye_p, m.astype(jnp.float32))

    def tile_row(r):                   # (1, D) -> (1, P*D), repeated per patch slot
        return jnp.tile(r.astype(jnp.float32), (1, P))

    # constant CLS-token quantities (query / key / value of the CLS row)
    cls_row = params["cls"] + params["pos"][0:1]                        # (1, D)
    xn_cls = ln(cls_row, params["g1"], params["be1"])
    q_s = (xn_cls @ params["wq"] + params["bq"]) * scale                # pre-scaled CLS query

    head_map = (jnp.arange(D)[:, None] // HD ==
                jnp.arange(HEADS)[None, :]).astype(jnp.float32)         # (D, H)
    wks = params["wk"] @ (q_s[0][:, None] * head_map)                   # (D, H) score weight
    bs = (params["bk"] * q_s) @ head_map                                # (1, H) score bias
    s_cls = xn_cls @ wks + bs                                           # (1, H) CLS-key score
    v_cls = xn_cls @ params["wv"] + params["bv"]                        # (1, D) CLS-key value

    # wide (4-tokens-per-row) constant matrices
    m1 = bdiag(jnp.full((D, D), 1.0 / D, jnp.float32))                  # (128, 128)
    wv_big = bdiag(params["wv"])                                        # (128, 128)
    wks_big = bdiag(wks)                                                # (128, 16)
    pick_blk = (jnp.arange(HEADS)[:, None] ==
                (jnp.arange(D) // HD)[None, :]).astype(jnp.float32)     # (H, D)
    ppick = bdiag(pick_blk)                                             # (16, 128)
    cpick = jnp.kron(jnp.zeros((P, 1), jnp.float32).at[0, 0].set(1.0), pick_blk)   # (16, 32)
    fold = jnp.kron(jnp.ones((P, 1), jnp.float32), jnp.eye(D, dtype=jnp.float32))  # (128, 32)
    sum_head = jnp.kron(jnp.ones((P, P), jnp.float32),
                        jnp.eye(HEADS, dtype=jnp.float32))              # (16, 16)
    add_wide = (params["pos"][1:P + 1] + params["bp"]).reshape(1, WIDE)

    wbf = jnp.concatenate([bdiag(params["wp"]), m1, wv_big],
                          axis=0).astype(jnp.bfloat16)                  # (1024, 128)

    m_a = jnp.concatenate([
        ppick, params["wm1"], add_wide,
        tile_row(params["g1"]), tile_row(params["be1"]),
        tile_row(params["bv"]), params["bm1"]], axis=0).astype(jnp.float32)   # (53, 128)

    m_b = jnp.concatenate([
        fold, cpick, params["wo"], params["wm2"],
        cls_row, params["bo"], v_cls, params["g2"], params["be2"],
        params["bm2"], params["gf"], params["bef"]], axis=0).astype(jnp.float32)  # (312, 32)

    m_c = jnp.concatenate([wks_big, sum_head,
                           jnp.tile(bs - s_cls, (1, P))], axis=0).astype(jnp.float32)  # (145, 16)

    return wbf, m_a, m_b, m_c


def pretrained_embedding_forward(images, params, batch_tile=1024):
    """images: NCHW float32 [B, 3, 16, 16] -> CLS embeddings [B, D]."""
    B = images.shape[0]
    # TODO(synk): the NCHW->patch flattening transpose still costs one host-side HBM
    # copy of the input; fuse it into the producer if end-to-end bandwidth matters.
    x = _patchify(images).reshape(B, XW).astype(jnp.bfloat16)    # dense, no pad rows

    # batch tile: multiple of 16 (bf16 sublane packing), capped so large batches keep
    # >= 2 grid steps (both v7x TensorCores get work on the "parallel" axis).
    tb_cap = 16 * ((max(1, (B + 1) // 2) + 15) // 16)
    TB = max(16, min(int(batch_tile) // 16 * 16, tb_cap))
    Bp = ((B + TB - 1) // TB) * TB
    if Bp != B:
        x = jnp.pad(x, ((0, Bp - B), (0, 0)))

    wbf, m_a, m_b, m_c = _pack_params(params)

    out = pl.pallas_call(
        vit_cls_kernel,
        out_shape=jax.ShapeDtypeStruct((Bp, D), jnp.float32),
        grid_spec=pltpu.PrefetchScalarGridSpec(
            num_scalar_prefetch=0,
            grid=(Bp // TB,),
            in_specs=[
                pl.BlockSpec((TB, XW), lambda b: (b, 0)),
                pl.BlockSpec((W_ROWS, WIDE), lambda b: (0, 0)),
                pl.BlockSpec((A_ROWS, WIDE), lambda b: (0, 0)),
                pl.BlockSpec((B_ROWS, D), lambda b: (0, 0)),
                pl.BlockSpec((C_ROWS, PH), lambda b: (0, 0)),
            ],
            out_specs=pl.BlockSpec((TB, D), lambda b: (b, 0)),
        ),
        compiler_params=pltpu.CompilerParams(
            dimension_semantics=("parallel",),
            vmem_limit_bytes=32 * 1024 * 1024),
    )(x, wbf, m_a, m_b, m_c)
    return out[:B]


def reference_forward(images, params):
    """Pure-JAX f32 reference of the same synthetic encoder (per-image math)."""
    patches = _patchify(images)                                          # (B, P, PD)
    pe = patches @ params["wp"] + params["bp"]
    cls = jnp.broadcast_to(params["cls"], (patches.shape[0], 1, D))
    tokens = jnp.concatenate([cls, pe], axis=1) + params["pos"][None]

    def ln(v, g, b):
        mu = jnp.mean(v, -1, keepdims=True)
        var = jnp.mean((v - mu) ** 2, -1, keepdims=True)
        return (v - mu) * jax.lax.rsqrt(var + LN_EPS) * g + b

    xn = ln(tokens, params["g1"], params["be1"])
    q = xn @ params["wq"] + params["bq"]
    k = xn @ params["wk"] + params["bk"]
    v = xn @ params["wv"] + params["bv"]
    scale = 1.0 / jnp.sqrt(jnp.float32(HD))
    outs = []
    for h in range(HEADS):
        sl = slice(h * HD, (h + 1) * HD)
        s = jnp.einsum("bqd,bkd->bqk", q[..., sl], k[..., sl]) * scale
        s = s - jnp.max(s, -1, keepdims=True)
        pr = jnp.exp(s)
        pr = pr / jnp.sum(pr, -1, keepdims=True)
        outs.append(jnp.einsum("bqk,bkd->bqd", pr, v[..., sl]))
    attn = jnp.concatenate(outs, -1) @ params["wo"] + params["bo"]
    tokens = tokens + attn
    xn2 = ln(tokens, params["g2"], params["be2"])
    h1 = jax.nn.gelu(xn2 @ params["wm1"] + params["bm1"], approximate=True)
    tokens = tokens + (h1 @ params["wm2"] + params["bm2"])
    tokens = ln(tokens, params["gf"], params["bef"])
    return tokens[:, 0, :]


if __name__ == "__main__":
    key = jax.random.PRNGKey(0)
    k_img, k_par = jax.random.split(key)
    images = jax.random.normal(k_img, (2, C_IN, IMG, IMG), jnp.float32)
    params = make_params(k_par)

    emb = pretrained_embedding_forward(images, params)
    emb = jax.block_until_ready(emb)

    assert emb.shape == (2, D), emb.shape
    assert bool(jnp.all(jnp.isfinite(emb)))

    ref = reference_forward(images, params)
    # bf16 input / patch-embed quantization (with f32 accumulation) bounds the kernel's
    # deviation from the pure-f32 reference well below this tolerance.
    assert bool(jnp.allclose(emb, ref, atol=2e-2, rtol=2e-2)), \
        float(jnp.max(jnp.abs(emb - ref)))
    print("KERNEL_OK")
</pallas_src>

<mosaic_0001>
module attributes {stable_mosaic.version = 11 : i64} {
  func.func @vit_cls_kernel(%arg0: i32, %arg1: memref<16x768xbf16, #tpu.memory_space<vmem>>, %arg2: memref<1024x128xbf16, #tpu.memory_space<vmem>>, %arg3: memref<53x128xf32, #tpu.memory_space<vmem>>, %arg4: memref<312x32xf32, #tpu.memory_space<vmem>>, %arg5: memref<145x16xf32, #tpu.memory_space<vmem>>, %arg6: memref<16x32xf32, #tpu.memory_space<vmem>>) attributes {dimension_semantics = [#tpu.dimension_semantics<parallel>], iteration_bounds = array<i64: 1>, scalar_prefetch = 0 : i64, scratch_operands = 0 : i64, tpu.core_type = #tpu.core_type<tc>, window_params = [{transform_indices = @transform_0, window_bounds = array<i64: 16, 768>}, {pipeline_mode = #tpu.pipeline_mode<synchronous>, transform_indices = @transform_1, window_bounds = array<i64: 1024, 128>}, {pipeline_mode = #tpu.pipeline_mode<synchronous>, transform_indices = @transform_2, window_bounds = array<i64: 53, 128>}, {pipeline_mode = #tpu.pipeline_mode<synchronous>, transform_indices = @transform_3, window_bounds = array<i64: 312, 32>}, {pipeline_mode = #tpu.pipeline_mode<synchronous>, transform_indices = @transform_4, window_bounds = array<i64: 145, 16>}, {transform_indices = @transform_5, window_bounds = array<i64: 16, 32>}]} {
    %c0 = arith.constant 0 : index
    %c0_0 = arith.constant 0 : index
    %0 = vector.load %arg2[%c0, %c0_0] : memref<1024x128xbf16, #tpu.memory_space<vmem>>, vector<768x128xbf16>
    %c768 = arith.constant 768 : index
    %c0_1 = arith.constant 0 : index
    %1 = vector.load %arg2[%c768, %c0_1] : memref<1024x128xbf16, #tpu.memory_space<vmem>>, vector<128x128xbf16>
    %c896 = arith.constant 896 : index
    %c0_2 = arith.constant 0 : index
    %2 = vector.load %arg2[%c896, %c0_2] : memref<1024x128xbf16, #tpu.memory_space<vmem>>, vector<128x128xbf16>
    %c0_3 = arith.constant 0 : index
    %c0_4 = arith.constant 0 : index
    %3 = vector.load %arg3[%c0_3, %c0_4] : memref<53x128xf32, #tpu.memory_space<vmem>>, vector<16x128xf32>
    %c16 = arith.constant 16 : index
    %c0_5 = arith.constant 0 : index
    %4 = vector.load %arg3[%c16, %c0_5] : memref<53x128xf32, #tpu.memory_space<vmem>>, vector<32x128xf32>
    %c48 = arith.constant 48 : index
    %c0_6 = arith.constant 0 : index
    %5 = vector.load %arg3[%c48, %c0_6] : memref<53x128xf32, #tpu.memory_space<vmem>>, vector<1x128xf32>
    %c49 = arith.constant 49 : index
    %c0_7 = arith.constant 0 : index
    %6 = vector.load %arg3[%c49, %c0_7] : memref<53x128xf32, #tpu.memory_space<vmem>>, vector<1x128xf32>
    %c50 = arith.constant 50 : index
    %c0_8 = arith.constant 0 : index
    %7 = vector.load %arg3[%c50, %c0_8] : memref<53x128xf32, #tpu.memory_space<vmem>>, vector<1x128xf32>
    %c51 = arith.constant 51 : index
    %c0_9 = arith.constant 0 : index
    %8 = vector.load %arg3[%c51, %c0_9] : memref<53x128xf32, #tpu.memory_space<vmem>>, vector<1x128xf32>
    %c52 = arith.constant 52 : index
    %c0_10 = arith.constant 0 : index
    %9 = vector.load %arg3[%c52, %c0_10] : memref<53x128xf32, #tpu.memory_space<vmem>>, vector<1x128xf32>
    %c0_11 = arith.constant 0 : index
    %c0_12 = arith.constant 0 : index
    %10 = vector.load %arg4[%c0_11, %c0_12] : memref<312x32xf32, #tpu.memory_space<vmem>>, vector<128x32xf32>
    %c128 = arith.constant 128 : index
    %c0_13 = arith.constant 0 : index
    %11 = vector.load %arg4[%c128, %c0_13] : memref<312x32xf32, #tpu.memory_space<vmem>>, vector<16x32xf32>
    %c144 = arith.constant 144 : index
    %c0_14 = arith.constant 0 : index
    %12 = vector.load %arg4[%c144, %c0_14] : memref<312x32xf32, #tpu.memory_space<vmem>>, vector<32x32xf32>
    %c176 = arith.constant 176 : index
    %c0_15 = arith.constant 0 : index
    %13 = vector.load %arg4[%c176, %c0_15] : memref<312x32xf32, #tpu.memory_space<vmem>>, vector<128x32xf32>
    %c304 = arith.constant 304 : index
    %c0_16 = arith.constant 0 : index
    %14 = vector.load %arg4[%c304, %c0_16] : memref<312x32xf32, #tpu.memory_space<vmem>>, vector<1x32xf32>
    %c305 = arith.constant 305 : index
    %c0_17 = arith.constant 0 : index
    %15 = vector.load %arg4[%c305, %c0_17] : memref<312x32xf32, #tpu.memory_space<vmem>>, vector<1x32xf32>
    %c306 = arith.constant 306 : index
    %c0_18 = arith.constant 0 : index
    %16 = vector.load %arg4[%c306, %c0_18] : memref<312x32xf32, #tpu.memory_space<vmem>>, vector<1x32xf32>
    %c307 = arith.constant 307 : index
    %c0_19 = arith.constant 0 : index
    %17 = vector.load %arg4[%c307, %c0_19] : memref<312x32xf32, #tpu.memory_space<vmem>>, vector<1x32xf32>
    %c308 = arith.constant 308 : index
    %c0_20 = arith.constant 0 : index
    %18 = vector.load %arg4[%c308, %c0_20] : memref<312x32xf32, #tpu.memory_space<vmem>>, vector<1x32xf32>
    %c309 = arith.constant 309 : index
    %c0_21 = arith.constant 0 : index
    %19 = vector.load %arg4[%c309, %c0_21] : memref<312x32xf32, #tpu.memory_space<vmem>>, vector<1x32xf32>
    %c310 = arith.constant 310 : index
    %c0_22 = arith.constant 0 : index
    %20 = vector.load %arg4[%c310, %c0_22] : memref<312x32xf32, #tpu.memory_space<vmem>>, vector<1x32xf32>
    %c311 = arith.constant 311 : index
    %c0_23 = arith.constant 0 : index
    %21 = vector.load %arg4[%c311, %c0_23] : memref<312x32xf32, #tpu.memory_space<vmem>>, vector<1x32xf32>
    %c0_24 = arith.constant 0 : index
    %c0_25 = arith.constant 0 : index
    %22 = vector.load %arg5[%c0_24, %c0_25] : memref<145x16xf32, #tpu.memory_space<vmem>>, vector<128x16xf32>
    %c128_26 = arith.constant 128 : index
    %c0_27 = arith.constant 0 : index
    %23 = vector.load %arg5[%c128_26, %c0_27] : memref<145x16xf32, #tpu.memory_space<vmem>>, vector<16x16xf32>
    %c144_28 = arith.constant 144 : index
    %c0_29 = arith.constant 0 : index
    %24 = vector.load %arg5[%c144_28, %c0_29] : memref<145x16xf32, #tpu.memory_space<vmem>>, vector<1x16xf32>
    %c0_30 = arith.constant 0 : index
    %c0_31 = arith.constant 0 : index
    %25 = vector.load %arg1[%c0_30, %c0_31] : memref<16x768xbf16, #tpu.memory_space<vmem>>, vector<16x768xbf16>
    %cst = arith.constant dense<0.000000e+00> : vector<16x128xf32>
    %26 = tpu.matmul %25, %0, %cst {dimension_numbers = #tpu.dot_dimension_numbers<[1], [0], [0], [1], [0, 0, 1, 1], [], []>} : vector<16x768xbf16>, vector<768x128xbf16>, vector<16x128xf32> -> vector<16x128xf32>
    %27 = vector.broadcast %5 : vector<1x128xf32> to vector<16x128xf32>
    %28 = arith.addf %26, %27 : vector<16x128xf32>
    %29 = arith.truncf %28 : vector<16x128xf32> to vector<16x128xbf16>
    %cst_32 = arith.constant dense<0.000000e+00> : vector<16x128xf32>
    %30 = tpu.matmul %29, %1, %cst_32 {dimension_numbers = #tpu.dot_dimension_numbers<[1], [0], [0], [1], [0, 0, 1, 1], [], []>} : vector<16x128xbf16>, vector<128x128xbf16>, vector<16x128xf32> -> vector<16x128xf32>
    %31 = arith.subf %28, %30 : vector<16x128xf32>
    %32 = arith.mulf %31, %31 : vector<16x128xf32>
    %33 = arith.truncf %32 : vector<16x128xf32> to vector<16x128xbf16>
    %cst_33 = arith.constant dense<0.000000e+00> : vector<16x128xf32>
    %34 = tpu.matmul %33, %1, %cst_33 {dimension_numbers = #tpu.dot_dimension_numbers<[1], [0], [0], [1], [0, 0, 1, 1], [], []>} : vector<16x128xbf16>, vector<128x128xbf16>, vector<16x128xf32> -> vector<16x128xf32>
    %cst_34 = arith.constant 9.99999997E-7 : f32
    %35 = vector.broadcast %cst_34 : f32 to vector<16x128xf32>
    %36 = arith.addf %34, %35 : vector<16x128xf32>
    %37 = math.rsqrt %36 : vector<16x128xf32>
    %38 = arith.mulf %31, %37 : vector<16x128xf32>
    %39 = vector.broadcast %6 : vector<1x128xf32> to vector<16x128xf32>
    %40 = arith.mulf %38, %39 : vector<16x128xf32>
    %41 = vector.broadcast %7 : vector<1x128xf32> to vector<16x128xf32>
    %42 = arith.addf %40, %41 : vector<16x128xf32>
    %cst_35 = arith.constant dense<0.000000e+00> : vector<16x16xf32>
    %43 = tpu.matmul %42, %22, %cst_35 {dimension_numbers = #tpu.dot_dimension_numbers<[1], [0], [0], [1], [0, 0, 1, 1], [], []>} : vector<16x128xf32>, vector<128x16xf32>, vector<16x16xf32> -> vector<16x16xf32>
    %44 = vector.broadcast %24 : vector<1x16xf32> to vector<16x16xf32>
    %45 = arith.addf %43, %44 : vector<16x16xf32>
    %46 = math.exp %45 : vector<16x16xf32>
    %cst_36 = arith.constant dense<0.000000e+00> : vector<16x16xf32>
    %47 = tpu.matmul %46, %23, %cst_36 {dimension_numbers = #tpu.dot_dimension_numbers<[1], [0], [0], [1], [0, 0, 1, 1], [], []>} : vector<16x16xf32>, vector<16x16xf32>, vector<16x16xf32> -> vector<16x16xf32>
    %cst_37 = arith.constant 1.000000e+00 : f32
    %48 = vector.broadcast %cst_37 : f32 to vector<16x16xf32>
    %49 = arith.addf %47, %48 : vector<16x16xf32>
    %cst_38 = arith.constant 1.000000e+00 : f32
    %50 = vector.broadcast %cst_38 : f32 to vector<16x16xf32>
    %51 = arith.divf %50, %49 : vector<16x16xf32>
    %52 = arith.truncf %42 : vector<16x128xf32> to vector<16x128xbf16>
    %cst_39 = arith.constant dense<0.000000e+00> : vector<16x128xf32>
    %53 = tpu.matmul %52, %2, %cst_39 {dimension_numbers = #tpu.dot_dimension_numbers<[1], [0], [0], [1], [0, 0, 1, 1], [], []>} : vector<16x128xbf16>, vector<128x128xbf16>, vector<16x128xf32> -> vector<16x128xf32>
    %54 = vector.broadcast %8 : vector<1x128xf32> to vector<16x128xf32>
    %55 = arith.addf %53, %54 : vector<16x128xf32>
    %56 = arith.mulf %46, %51 : vector<16x16xf32>
    %cst_40 = arith.constant dense<0.000000e+00> : vector<16x128xf32>
    %57 = tpu.matmul %56, %3, %cst_40 {dimension_numbers = #tpu.dot_dimension_numbers<[1], [0], [0], [1], [0, 0, 1, 1], [], []>} : vector<16x16xf32>, vector<16x128xf32>, vector<16x128xf32> -> vector<16x128xf32>
    %58 = arith.mulf %57, %55 : vector<16x128xf32>
    %cst_41 = arith.constant dense<0.000000e+00> : vector<16x32xf32>
    %59 = tpu.matmul %58, %10, %cst_41 {dimension_numbers = #tpu.dot_dimension_numbers<[1], [0], [0], [1], [0, 0, 1, 1], [], []>} : vector<16x128xf32>, vector<128x32xf32>, vector<16x32xf32> -> vector<16x32xf32>
    %cst_42 = arith.constant dense<0.000000e+00> : vector<16x32xf32>
    %60 = tpu.matmul %51, %11, %cst_42 {dimension_numbers = #tpu.dot_dimension_numbers<[1], [0], [0], [1], [0, 0, 1, 1], [], []>} : vector<16x16xf32>, vector<16x32xf32>, vector<16x32xf32> -> vector<16x32xf32>
    %61 = vector.broadcast %16 : vector<1x32xf32> to vector<16x32xf32>
    %62 = arith.mulf %60, %61 : vector<16x32xf32>
    %63 = arith.addf %59, %62 : vector<16x32xf32>
    %cst_43 = arith.constant dense<0.000000e+00> : vector<16x32xf32>
    %64 = tpu.matmul %63, %12, %cst_43 {dimension_numbers = #tpu.dot_dimension_numbers<[1], [0], [0], [1], [0, 0, 1, 1], [], []>} : vector<16x32xf32>, vector<32x32xf32>, vector<16x32xf32> -> vector<16x32xf32>
    %65 = vector.broadcast %14 : vector<1x32xf32> to vector<16x32xf32>
    %66 = arith.addf %65, %64 : vector<16x32xf32>
    %67 = vector.broadcast %15 : vector<1x32xf32> to vector<16x32xf32>
    %68 = arith.addf %66, %67 : vector<16x32xf32>
    %cst_44 = arith.constant dense<0.000000e+00> : vector<16xf32>
    %69 = vector.multi_reduction <add>, %68, %cst_44 [1] : vector<16x32xf32> to vector<16xf32>
    %70 = vector.shape_cast %69 : vector<16xf32> to vector<16x1xf32>
    %cst_45 = arith.constant 3.200000e+01 : f32
    %71 = vector.broadcast %cst_45 : f32 to vector<16x1xf32>
    %72 = arith.divf %70, %71 : vector<16x1xf32>
    %73 = vector.broadcast %72 : vector<16x1xf32> to vector<16x32xf32>
    %74 = arith.subf %68, %73 : vector<16x32xf32>
    %75 = arith.mulf %74, %74 : vector<16x32xf32>
    %cst_46 = arith.constant dense<0.000000e+00> : vector<16xf32>
    %76 = vector.multi_reduction <add>, %75, %cst_46 [1] : vector<16x32xf32> to vector<16xf32>
    %77 = vector.shape_cast %76 : vector<16xf32> to vector<16x1xf32>
    %cst_47 = arith.constant 3.200000e+01 : f32
    %78 = vector.broadcast %cst_47 : f32 to vector<16x1xf32>
    %79 = arith.divf %77, %78 : vector<16x1xf32>
    %80 = vector.broadcast %72 : vector<16x1xf32> to vector<16x32xf32>
    %81 = arith.subf %68, %80 : vector<16x32xf32>
    %cst_48 = arith.constant 9.99999997E-7 : f32
    %82 = vector.broadcast %cst_48 : f32 to vector<16x1xf32>
    %83 = arith.addf %79, %82 : vector<16x1xf32>
    %84 = math.rsqrt %83 : vector<16x1xf32>
    %85 = vector.broadcast %84 : vector<16x1xf32> to vector<16x32xf32>
    %86 = arith.mulf %81, %85 : vector<16x32xf32>
    %87 = vector.broadcast %17 : vector<1x32xf32> to vector<16x32xf32>
    %88 = arith.mulf %86, %87 : vector<16x32xf32>
    %89 = vector.broadcast %18 : vector<1x32xf32> to vector<16x32xf32>
    %90 = arith.addf %88, %89 : vector<16x32xf32>
    %cst_49 = arith.constant dense<0.000000e+00> : vector<16x128xf32>
    %91 = tpu.matmul %90, %4, %cst_49 {dimension_numbers = #tpu.dot_dimension_numbers<[1], [0], [0], [1], [0, 0, 1, 1], [], []>} : vector<16x32xf32>, vector<32x128xf32>, vector<16x128xf32> -> vector<16x128xf32>
    %92 = vector.broadcast %9 : vector<1x128xf32> to vector<16x128xf32>
    %93 = arith.addf %91, %92 : vector<16x128xf32>
    %94 = arith.mulf %93, %93 : vector<16x128xf32>
    %95 = arith.mulf %93, %94 : vector<16x128xf32>
    %cst_50 = arith.constant 4.471500e-02 : f32
    %96 = vector.broadcast %cst_50 : f32 to vector<16x128xf32>
    %97 = arith.mulf %96, %95 : vector<16x128xf32>
    %98 = arith.addf %93, %97 : vector<16x128xf32>
    %cst_51 = arith.constant 0.797884583 : f32
    %99 = vector.broadcast %cst_51 : f32 to vector<16x128xf32>
    %100 = arith.mulf %99, %98 : vector<16x128xf32>
    %101 = math.tanh %100 : vector<16x128xf32>
    %cst_52 = arith.constant 1.000000e+00 : f32
    %102 = vector.broadcast %cst_52 : f32 to vector<16x128xf32>
    %103 = arith.addf %102, %101 : vector<16x128xf32>
    %cst_53 = arith.constant 5.000000e-01 : f32
    %104 = vector.broadcast %cst_53 : f32 to vector<16x128xf32>
    %105 = arith.mulf %104, %103 : vector<16x128xf32>
    %106 = arith.mulf %93, %105 : vector<16x128xf32>
    %cst_54 = arith.constant dense<0.000000e+00> : vector<16x32xf32>
    %107 = tpu.matmul %106, %13, %cst_54 {dimension_numbers = #tpu.dot_dimension_numbers<[1], [0], [0], [1], [0, 0, 1, 1], [], []>} : vector<16x128xf32>, vector<128x32xf32>, vector<16x32xf32> -> vector<16x32xf32>
    %108 = vector.broadcast %19 : vector<1x32xf32> to vector<16x32xf32>
    %109 = arith.addf %107, %108 : vector<16x32xf32>
    %110 = arith.addf %68, %109 : vector<16x32xf32>
    %cst_55 = arith.constant dense<0.000000e+00> : vector<16xf32>
    %111 = vector.multi_reduction <add>, %110, %cst_55 [1] : vector<16x32xf32> to vector<16xf32>
    %112 = vector.shape_cast %111 : vector<16xf32> to vector<16x1xf32>
    %cst_56 = arith.constant 3.200000e+01 : f32
    %113 = vector.broadcast %cst_56 : f32 to vector<16x1xf32>
    %114 = arith.divf %112, %113 : vector<16x1xf32>
    %115 = vector.broadcast %114 : vector<16x1xf32> to vector<16x32xf32>
    %116 = arith.subf %110, %115 : vector<16x32xf32>
    %117 = arith.mulf %116, %116 : vector<16x32xf32>
    %cst_57 = arith.constant dense<0.000000e+00> : vector<16xf32>
    %118 = vector.multi_reduction <add>, %117, %cst_57 [1] : vector<16x32xf32> to vector<16xf32>
    %119 = vector.shape_cast %118 : vector<16xf32> to vector<16x1xf32>
    %cst_58 = arith.constant 3.200000e+01 : f32
    %120 = vector.broadcast %cst_58 : f32 to vector<16x1xf32>
    %121 = arith.divf %119, %120 : vector<16x1xf32>
    %122 = vector.broadcast %114 : vector<16x1xf32> to vector<16x32xf32>
    %123 = arith.subf %110, %122 : vector<16x32xf32>
    %cst_59 = arith.constant 9.99999997E-7 : f32
    %124 = vector.broadcast %cst_59 : f32 to vector<16x1xf32>
    %125 = arith.addf %121, %124 : vector<16x1xf32>
    %126 = math.rsqrt %125 : vector<16x1xf32>
    %127 = vector.broadcast %126 : vector<16x1xf32> to vector<16x32xf32>
    %128 = arith.mulf %123, %127 : vector<16x32xf32>
    %129 = vector.broadcast %20 : vector<1x32xf32> to vector<16x32xf32>
    %130 = arith.mulf %128, %129 : vector<16x32xf32>
    %131 = vector.broadcast %21 : vector<1x32xf32> to vector<16x32xf32>
    %132 = arith.addf %130, %131 : vector<16x32xf32>
    %c0_60 = arith.constant 0 : index
    %c0_61 = arith.constant 0 : index
    %133 = vector.load %arg6[%c0_60, %c0_61] : memref<16x32xf32, #tpu.memory_space<vmem>>, vector<16x32xf32>
    tpu.vector_store %arg6[%c0_60, %c0_61], %132 {strides = array<i32>} : memref<16x32xf32, #tpu.memory_space<vmem>>, vector<16x32xf32>,
    return
  }
  func.func @transform_0(%arg0: i32) -> (i32, i32) {
    %c0_i32 = arith.constant 0 : i32
    %c0_i32_0 = arith.constant 0 : i32
    return %arg0, %c0_i32 : i32, i32
  }
  func.func @transform_1(%arg0: i32) -> (i32, i32) {
    %c0_i32 = arith.constant 0 : i32
    %c0_i32_0 = arith.constant 0 : i32
    %c0_i32_1 = arith.constant 0 : i32
    return %c0_i32, %c0_i32_0 : i32, i32
  }
  func.func @transform_2(%arg0: i32) -> (i32, i32) {
    %c0_i32 = arith.constant 0 : i32
    %c0_i32_0 = arith.constant 0 : i32
    %c0_i32_1 = arith.constant 0 : i32
    return %c0_i32, %c0_i32_0 : i32, i32
  }
  func.func @transform_3(%arg0: i32) -> (i32, i32) {
    %c0_i32 = arith.constant 0 : i32
    %c0_i32_0 = arith.constant 0 : i32
    %c0_i32_1 = arith.constant 0 : i32
    return %c0_i32, %c0_i32_0 : i32, i32
  }
  func.func @transform_4(%arg0: i32) -> (i32, i32) {
    %c0_i32 = arith.constant 0 : i32
    %c0_i32_0 = arith.constant 0 : i32
    %c0_i32_1 = arith.constant 0 : i32
    return %c0_i32, %c0_i32_0 : i32, i32
  }
  func.func @transform_5(%arg0: i32) -> (i32, i32) {
    %c0_i32 = arith.constant 0 : i32
    %c0_i32_0 = arith.constant 0 : i32
    return %arg0, %c0_i32 : i32, i32
  }
}

</mosaic_0001>

<llo_original>
// kernel: tpu_custom_call.1
$region0: #{tpu_custom_call.1}
  #allocation0 [shape = 'u32[]', space=smem, size = 0x4, offset = 0x4, fixed_abs, tag = 'smem constant byte address 0x4 - core index']
  #allocation1 [shape = 'u32[144,128]{1,0:T(1,128)}', space=vmem, size = 0x12000, scoped, tag = 'internal scratch']
  %s0 = inlined_call_operand.hbm [shape: bf16[16,768], index: 0, kind: input, shape index: {}]
  %s1 = inlined_call_operand.vmem [shape: bf16[1024,128], index: 1, kind: input, shape index: {}]
  %s2 = inlined_call_operand.vmem [shape: f32[53,128], index: 2, kind: input, shape index: {}]
  %s3 = inlined_call_operand.vmem [shape: f32[312,32], index: 3, kind: input, shape index: {}]
  %s4 = inlined_call_operand.vmem [shape: f32[145,16], index: 4, kind: input, shape index: {}]
  %s5 = inlined_call_operand.hbm [shape: f32[16,32], index: 5, kind: output, shape index: {}]
  %s6 = sld [smem:[#allocation0]]
  $region34: #{tpu_custom_call.1} parent=0
    _
  %s8 = ssub.s32 1, %s6
  %s9 = scalar_select 0, %s8, %s6
  $region1: #{tpu_custom_call.1} parent=0
    #allocation2 [shape = 'u8[24576]{0}', space=vmem, size = 0x6000, scoped, tag = 'input window, operand 0, single buffered']
    #allocation3 [shape = 's32[1]{0}', space=sflag, size = 0x4, scoped, tag = 'scoped memory for tpu_custom_call.1']
    #allocation4 [shape = 's32[1]{0}', space=sflag, size = 0x4, scoped, tag = 'scoped memory for tpu_custom_call.1']
    #allocation5 [shape = 'u8[8192]{0}', space=vmem, size = 0x2000, scoped, tag = 'output window, operand 0, single buffered']
    %10 = vsyncpa [#allocation3], 0
    %11 = vsyncpa [#allocation4], 0
    // Predicated region
    $region2: #{tpu_custom_call.1} parent=1 // pred_check
      _
    $region3: #{tpu_custom_call.1} parent=1 // pred_check_branch
      %13 = sbr.rel (0) target = $region5
    $region4: #{tpu_custom_call.1} parent=1 // pred_region
      %s15 = ssub.s32 768, 768
      %16 = vsyncadd [#allocation3], %s15
      %s17 = sshll.u32 [#allocation2], 4
      %s18 = int_to_ptr.vmem [resolvable:$true] %s17
      %23 = dma.hbm_to_vmem [thread:$0]  %s0, 768, %s18, [#allocation3], 384, 384, 24
    $region5: #{tpu_custom_call.1} parent=1 // pred_fallthru
      _
    // Predicated region
    $region6: #{tpu_custom_call.1} parent=1 // pred_check
      _
    $region7: #{tpu_custom_call.1} parent=1 // pred_check_branch
      %25 = sbr.rel (0) target = $region9
    $region8: #{tpu_custom_call.1} parent=1 // pred_region
      _
    $region9: #{tpu_custom_call.1} parent=1 // pred_fallthru
      _
    // Predicated region
    $region10: #{tpu_custom_call.1} parent=1 // pred_check
      _
    $region11: #{tpu_custom_call.1} parent=1 // pred_check_branch
      %27 = sbr.rel (0) target = $region13
    $region12: #{tpu_custom_call.1} parent=1 // pred_region
      _
    $region13: #{tpu_custom_call.1} parent=1 // pred_fallthru
      _
    // Predicated region
    $region14: #{tpu_custom_call.1} parent=1 // pred_check
      _
    $region15: #{tpu_custom_call.1} parent=1 // pred_check_branch
      %29 = sbr.rel (0) target = $region17
    $region16: #{tpu_custom_call.1} parent=1 // pred_region
      _
    $region17: #{tpu_custom_call.1} parent=1 // pred_fallthru
      _
    // Predicated region
    $region18: #{tpu_custom_call.1} parent=1 // pred_check
      _
    $region19: #{tpu_custom_call.1} parent=1 // pred_check_branch
      %31 = sbr.rel (0) target = $region21
    $region20: #{tpu_custom_call.1} parent=1 // pred_region
      _
    $region21: #{tpu_custom_call.1} parent=1 // pred_fallthru
      _
    // Predicated region
    $region22: #{tpu_custom_call.1} parent=1 // pred_check
      _
    $region23: #{tpu_custom_call.1} parent=1 // pred_check_branch
      %33 = sbr.rel (0) target = $region25
    $region24: #{tpu_custom_call.1} parent=1 // pred_region
      %34 = dma.done [#allocation3], 768
    $region25: #{tpu_custom_call.1} parent=1 // pred_fallthru
      _
    %v36 = vld [vmem:[%s1] sm:$0xf]
    %v37 = vld [vmem:[%s1 + $0x4] sm:$0xf]
    %v38 = vld [vmem:[%s1 + $0x8] sm:$0xf]
    %v39 = vld [vmem:[%s1 + $0xc] sm:$0xf]
    %v40 = vld [vmem:[%s1 + $0x10] sm:$0xf]
    %v41 = vld [vmem:[%s1 + $0x14] sm:$0xf]
    %v42 = vld [vmem:[%s1 + $0x18] sm:$0xf]
    %v43 = vld [vmem:[%s1 + $0x1c] sm:$0xf]
    %v44 = vld [vmem:[%s1 + $0x20] sm:$0xf]
    %v45 = vld [vmem:[%s1 + $0x24] sm:$0xf]
    %v46 = vld [vmem:[%s1 + $0x28] sm:$0xf]
    %v47 = vld [vmem:[%s1 + $0x2c] sm:$0xf]
    %v48 = vld [vmem:[%s1 + $0x30] sm:$0xf]
    %v49 = vld [vmem:[%s1 + $0x34] sm:$0xf]
    %v50 = vld [vmem:[%s1 + $0x38] sm:$0xf]
    %v51 = vld [vmem:[%s1 + $0x3c] sm:$0xf]
    %v52 = vld [vmem:[%s1 + $0x40] sm:$0xf]
    %v53 = vld [vmem:[%s1 + $0x44] sm:$0xf]
    %v54 = vld [vmem:[%s1 + $0x48] sm:$0xf]
    %v55 = vld [vmem:[%s1 + $0x4c] sm:$0xf]
    %v56 = vld [vmem:[%s1 + $0x50] sm:$0xf]
    %v57 = vld [vmem:[%s1 + $0x54] sm:$0xf]
    %v58 = vld [vmem:[%s1 + $0x58] sm:$0xf]
    %v59 = vld [vmem:[%s1 + $0x5c] sm:$0xf]
    %v60 = vld [vmem:[%s1 + $0x60] sm:$0xf]
    %v61 = vld [vmem:[%s1 + $0x64] sm:$0xf]
    %v62 = vld [vmem:[%s1 + $0x68] sm:$0xf]
    %v63 = vld [vmem:[%s1 + $0x6c] sm:$0xf]
    %v64 = vld [vmem:[%s1 + $0x70] sm:$0xf]
    %v65 = vld [vmem:[%s1 + $0x74] sm:$0xf]
    %v66 = vld [vmem:[%s1 + $0x78] sm:$0xf]
    %v67 = vld [vmem:[%s1 + $0x7c] sm:$0xf]
    %v68 = vld [vmem:[%s1 + $0x80] sm:$0xf]
    %v69 = vld [vmem:[%s1 + $0x84] sm:$0xf]
    %v70 = vld [vmem:[%s1 + $0x88] sm:$0xf]
    %v71 = vld [vmem:[%s1 + $0x8c] sm:$0xf]
    %v72 = vld [vmem:[%s1 + $0x90] sm:$0xf]
    %v73 = vld [vmem:[%s1 + $0x94] sm:$0xf]
    %v74 = vld [vmem:[%s1 + $0x98] sm:$0xf]
    %v75 = vld [vmem:[%s1 + $0x9c] sm:$0xf]
    %v76 = vld [vmem:[%s1 + $0xa0] sm:$0xf]
    %v77 = vld [vmem:[%s1 + $0xa4] sm:$0xf]
    %v78 = vld [vmem:[%s1 + $0xa8] sm:$0xf]
    %v79 = vld [vmem:[%s1 + $0xac] sm:$0xf]
    %v80 = vld [vmem:[%s1 + $0xb0] sm:$0xf]
    %v81 = vld [vmem:[%s1 + $0xb4] sm:$0xf]
    %v82 = vld [vmem:[%s1 + $0xb8] sm:$0xf]
    %v83 = vld [vmem:[%s1 + $0xbc] sm:$0xf]
    %v84 = vld [vmem:[%s1 + $0xc0] sm:$0xf]
    %v85 = vld [vmem:[%s1 + $0xc4] sm:$0xf]
    %v86 = vld [vmem:[%s1 + $0xc8] sm:$0xf]
    %v87 = vld [vmem:[%s1 + $0xcc] sm:$0xf]
    %v88 = vld [vmem:[%s1 + $0xd0] sm:$0xf]
    %v89 = vld [vmem:[%s1 + $0xd4] sm:$0xf]
    %v90 = vld [vmem:[%s1 + $0xd8] sm:$0xf]
    %v91 = vld [vmem:[%s1 + $0xdc] sm:$0xf]
    %v92 = vld [vmem:[%s1 + $0xe0] sm:$0xf]
    %v93 = vld [vmem:[%s1 + $0xe4] sm:$0xf]
    %v94 = vld [vmem:[%s1 + $0xe8] sm:$0xf]
    %v95 = vld [vmem:[%s1 + $0xec] sm:$0xf]
    %v96 = vld [vmem:[%s1 + $0xf0] sm:$0xf]
    %v97 = vld [vmem:[%s1 + $0xf4] sm:$0xf]
    %v98 = vld [vmem:[%s1 + $0xf8] sm:$0xf]
    %v99 = vld [vmem:[%s1 + $0xfc] sm:$0xf]
    %v100 = vld [vmem:[%s1 + $0x100] sm:$0xf]
    %v101 = vld [vmem:[%s1 + $0x104] sm:$0xf]
    %v102 = vld [vmem:[%s1 + $0x108] sm:$0xf]
    %v103 = vld [vmem:[%s1 + $0x10c] sm:$0xf]
    %v104 = vld [vmem:[%s1 + $0x110] sm:$0xf]
    %v105 = vld [vmem:[%s1 + $0x114] sm:$0xf]
    %v106 = vld [vmem:[%s1 + $0x118] sm:$0xf]
    %v107 = vld [vmem:[%s1 + $0x11c] sm:$0xf]
    %v108 = vld [vmem:[%s1 + $0x120] sm:$0xf]
    %v109 = vld [vmem:[%s1 + $0x124] sm:$0xf]
    %v110 = vld [vmem:[%s1 + $0x128] sm:$0xf]
    %v111 = vld [vmem:[%s1 + $0x12c] sm:$0xf]
    %v112 = vld [vmem:[%s1 + $0x130] sm:$0xf]
    %v113 = vld [vmem:[%s1 + $0x134] sm:$0xf]
    %v114 = vld [vmem:[%s1 + $0x138] sm:$0xf]
    %v115 = vld [vmem:[%s1 + $0x13c] sm:$0xf]
    %v116 = vld [vmem:[%s1 + $0x140] sm:$0xf]
    %v117 = vld [vmem:[%s1 + $0x144] sm:$0xf]
    %v118 = vld [vmem:[%s1 + $0x148] sm:$0xf]
    %v119 = vld [vmem:[%s1 + $0x14c] sm:$0xf]
    %v120 = vld [vmem:[%s1 + $0x150] sm:$0xf]
    %v121 = vld [vmem:[%s1 + $0x154] sm:$0xf]
    %v122 = vld [vmem:[%s1 + $0x158] sm:$0xf]
    %v123 = vld [vmem:[%s1 + $0x15c] sm:$0xf]
    %v124 = vld [vmem:[%s1 + $0x160] sm:$0xf]
    %v125 = vld [vmem:[%s1 + $0x164] sm:$0xf]
    %v126 = vld [vmem:[%s1 + $0x168] sm:$0xf]
    %v127 = vld [vmem:[%s1 + $0x16c] sm:$0xf]
    %v128 = vld [vmem:[%s1 + $0x170] sm:$0xf]
    %v129 = vld [vmem:[%s1 + $0x174] sm:$0xf]
    %v130 = vld [vmem:[%s1 + $0x178] sm:$0xf]
    %v131 = vld [vmem:[%s1 + $0x17c] sm:$0xf]
    %v132 = vld [vmem:[%s1 + $0x180] sm:$0xf]
    %v133 = vld [vmem:[%s1 + $0x184] sm:$0xf]
    %v134 = vld [vmem:[%s1 + $0x188] sm:$0xf]
    %v135 = vld [vmem:[%s1 + $0x18c] sm:$0xf]
    %v136 = vld [vmem:[%s1 + $0x190] sm:$0xf]
    %v137 = vld [vmem:[%s1 + $0x194] sm:$0xf]
    %v138 = vld [vmem:[%s1 + $0x198] sm:$0xf]
    %v139 = vld [vmem:[%s1 + $0x19c] sm:$0xf]
    %v140 = vld [vmem:[%s1 + $0x1a0] sm:$0xf]
    %v141 = vld [vmem:[%s1 + $0x1a4] sm:$0xf]
    %v142 = vld [vmem:[%s1 + $0x1a8] sm:$0xf]
    %v143 = vld [vmem:[%s1 + $0x1ac] sm:$0xf]
    %v144 = vld [vmem:[%s1 + $0x1b0] sm:$0xf]
    %v145 = vld [vmem:[%s1 + $0x1b4] sm:$0xf]
    %v146 = vld [vmem:[%s1 + $0x1b8] sm:$0xf]
    %v147 = vld [vmem:[%s1 + $0x1bc] sm:$0xf]
    %v148 = vld [vmem:[%s1 + $0x1c0] sm:$0xf]
    %v149 = vld [vmem:[%s1 + $0x1c4] sm:$0xf]
    %v150 = vld [vmem:[%s1 + $0x1c8] sm:$0xf]
    %v151 = vld [vmem:[%s1 + $0x1cc] sm:$0xf]
    %v152 = vld [vmem:[%s1 + $0x1d0] sm:$0xf]
    %v153 = vld [vmem:[%s1 + $0x1d4] sm:$0xf]
    %v154 = vld [vmem:[%s1 + $0x1d8] sm:$0xf]
    %v155 = vld [vmem:[%s1 + $0x1dc] sm:$0xf]
    %v156 = vld [vmem:[%s1 + $0x1e0] sm:$0xf]
    %v157 = vld [vmem:[%s1 + $0x1e4] sm:$0xf]
    %v158 = vld [vmem:[%s1 + $0x1e8] sm:$0xf]
    %v159 = vld [vmem:[%s1 + $0x1ec] sm:$0xf]
    %v160 = vld [vmem:[%s1 + $0x1f0] sm:$0xf]
    %v161 = vld [vmem:[%s1 + $0x1f4] sm:$0xf]
    %v162 = vld [vmem:[%s1 + $0x1f8] sm:$0xf]
    %v163 = vld [vmem:[%s1 + $0x1fc] sm:$0xf]
    %v164 = vld [vmem:[%s2] sm:$0xff]
    %v165 = vld [vmem:[%s2 + $0x8] sm:$0xff]
    %v166 = vld [vmem:[%s2 + $0x10] sm:$0xff]
    %v167 = vld [vmem:[%s2 + $0x18] sm:$0xff]
    %v168 = vld [vmem:[%s2 + $0x20] sm:$0xff]
    %v169 = vld [vmem:[%s2 + $0x28] sm:$0xff]
    %v170 = vld [vmem:[%s2 + $0x30] sm:$0x1]
    %v171 = vld [vmem:[%s2 + $0x31] sm:$0x1]
    %v172 = vld [vmem:[%s2 + $0x32] sm:$0x1]
    %v173 = vld [vmem:[%s2 + $0x33] sm:$0x1]
    %v174 = vld [vmem:[%s2 + $0x34] sm:$0x1]
    %v175 = vld [vmem:[%s3] sm:$0xff]
    %v176 = vld [vmem:[%s3 + $0x8] sm:$0xff]
    %v177 = vld [vmem:[%s3 + $0x10] sm:$0xff]
    %v178 = vld [vmem:[%s3 + $0x18] sm:$0xff]
    %v179 = vld [vmem:[%s3 + $0x20] sm:$0xff]
    %v180 = vld [vmem:[%s3 + $0x28] sm:$0xff]
    %v181 = vld [vmem:[%s3 + $0x30] sm:$0xff]
    %v182 = vld [vmem:[%s3 + $0x38] sm:$0xff]
    %v183 = vld [vmem:[%s3 + $0x40] sm:$0xff]
    %v184 = vld [vmem:[%s3 + $0x48] sm:$0xff]
    %v185 = vld [vmem:[%s3 + $0x50] sm:$0xff]
    %v186 = vld [vmem:[%s3 + $0x58] sm:$0xff]
    %v187 = vld [vmem:[%s3 + $0x60] sm:$0xff]
    %v188 = vld [vmem:[%s3 + $0x68] sm:$0xff]
    %v189 = vld [vmem:[%s3 + $0x70] sm:$0xff]
    %v190 = vld [vmem:[%s3 + $0x78] sm:$0xff]
    %v191 = vld [vmem:[%s3 + $0x80] sm:$0xff]
    %v192 = vld [vmem:[%s3 + $0x88] sm:$0xff]
    %v193 = vld [vmem:[%s3 + $0x90] sm:$0xff]
    %v194 = vld [vmem:[%s3 + $0x98] sm:$0xff]
    %v195 = vld [vmem:[%s3 + $0xa0] sm:$0xff]
    %v196 = vld [vmem:[%s3 + $0xa8] sm:$0xff]
    %v197 = vld [vmem:[%s3 + $0xb0] sm:$0xff]
    %v198 = vld [vmem:[%s3 + $0xb8] sm:$0xff]
    %v199 = vld [vmem:[%s3 + $0xc0] sm:$0xff]
    %v200 = vld [vmem:[%s3 + $0xc8] sm:$0xff]
    %v201 = vld [vmem:[%s3 + $0xd0] sm:$0xff]
    %v202 = vld [vmem:[%s3 + $0xd8] sm:$0xff]
    %v203 = vld [vmem:[%s3 + $0xe0] sm:$0xff]
    %v204 = vld [vmem:[%s3 + $0xe8] sm:$0xff]
    %v205 = vld [vmem:[%s3 + $0xf0] sm:$0xff]
    %v206 = vld [vmem:[%s3 + $0xf8] sm:$0xff]
    %v207 = vld [vmem:[%s3 + $0x100] sm:$0xff]
    %v208 = vld [vmem:[%s3 + $0x108] sm:$0xff]
    %v209 = vld [vmem:[%s3 + $0x110] sm:$0xff]
    %v210 = vld [vmem:[%s3 + $0x118] sm:$0xff]
    %v211 = vld [vmem:[%s3 + $0x120] sm:$0xff]
    %v212 = vld [vmem:[%s3 + $0x128] sm:$0xff]
    %v213 = vld [vmem:[%s3 + $0x130] sm:$0x1]
    %v214 = vld [vmem:[%s3 + $0x131] sm:$0x1]
    %v215 = vld [vmem:[%s3 + $0x132] sm:$0x1]
    %v216 = vld [vmem:[%s3 + $0x133] sm:$0x1]
    %v217 = vld [vmem:[%s3 + $0x134] sm:$0x1]
    %v218 = vld [vmem:[%s3 + $0x135] sm:$0x1]
    %v219 = vld [vmem:[%s3 + $0x136] sm:$0x1]
    %v220 = vld [vmem:[%s3 + $0x137] sm:$0x1]
    %v221 = vld [vmem:[%s4] sm:$0xff]
    %v222 = vld [vmem:[%s4 + $0x8] sm:$0xff]
    %v223 = vld [vmem:[%s4 + $0x10] sm:$0xff]
    %v224 = vld [vmem:[%s4 + $0x18] sm:$0xff]
    %v225 = vld [vmem:[%s4 + $0x20] sm:$0xff]
    %v226 = vld [vmem:[%s4 + $0x28] sm:$0xff]
    %v227 = vld [vmem:[%s4 + $0x30] sm:$0xff]
    %v228 = vld [vmem:[%s4 + $0x38] sm:$0xff]
    %v229 = vld [vmem:[%s4 + $0x40] sm:$0xff]
    %v230 = vld [vmem:[%s4 + $0x48] sm:$0xff]
    %v231 = vld [vmem:[%s4 + $0x50] sm:$0xff]
    %v232 = vld [vmem:[%s4 + $0x58] sm:$0xff]
    %v233 = vld [vmem:[%s4 + $0x60] sm:$0xff]
    %v234 = vld [vmem:[%s4 + $0x68] sm:$0xff]
    %v235 = vld [vmem:[%s4 + $0x70] sm:$0xff]
    %v236 = vld [vmem:[%s4 + $0x78] sm:$0xff]
    %v237 = vld [vmem:[%s4 + $0x80] sm:$0xff]
    %v238 = vld [vmem:[%s4 + $0x88] sm:$0xff]
    %v239 = vld [vmem:[%s4 + $0x90] sm:$0x1]
    %v240 = vld [vmem:[#allocation2] sm:$0xff]
    %v241 = vld [vmem:[#allocation2 + $0x8] sm:$0xff]
    %v242 = vld [vmem:[#allocation2 + $0x10] sm:$0xff]
    %v243 = vld [vmem:[#allocation2 + $0x18] sm:$0xff]
    %v244 = vld [vmem:[#allocation2 + $0x20] sm:$0xff]
    %v245 = vld [vmem:[#allocation2 + $0x28] sm:$0xff]
    %v246 = vlaneseq
    %v247 = vshrl.u32 %v246, 7
    %v248 = vsub.s32 0, %v247
    %v249 = vrot.slane %v170, %v248
    %v256 = vunpack.c.l.b16 %v240
    %v257 = vunpack.c.h.b16 %v240
    %v258 = vunpack.c.l.b16 %v241
    %v259 = vunpack.c.h.b16 %v241
    %v260 = vunpack.c.l.b16 %v242
    %v261 = vunpack.c.h.b16 %v242
    %v262 = vunpack.c.l.b16 %v243
    %v263 = vunpack.c.h.b16 %v243
    %v264 = vunpack.c.l.b16 %v244
    %v265 = vunpack.c.h.b16 %v244
    %v266 = vunpack.c.l.b16 %v245
    %v267 = vunpack.c.h.b16 %v245
    %v268 = vpack.c.b16 %v262, %v256
    %v269 = vpack.c.b16 %v263, %v257
    %v270 = vpack.c.b16 %v264, %v258
    %v271 = vpack.c.b16 %v265, %v259
    %v272 = vpack.c.b16 %v266, %v260
    %v273 = vpack.c.b16 %v267, %v261
    %v376 = vunpack.c.l.b16 %v36
    %v377 = vunpack.c.l.b16 %v37
    %v378 = vunpack.c.l.b16 %v38
    %v379 = vunpack.c.l.b16 %v39
    %v380 = vunpack.c.l.b16 %v40
    %v381 = vunpack.c.l.b16 %v41
    %v382 = vunpack.c.l.b16 %v42
    %v383 = vunpack.c.l.b16 %v43
    %v384 = vunpack.c.l.b16 %v44
    %v385 = vunpack.c.l.b16 %v45
    %v386 = vunpack.c.l.b16 %v46
    %v387 = vunpack.c.l.b16 %v47
    %v388 = vunpack.c.l.b16 %v48
    %v389 = vunpack.c.l.b16 %v49
    %v390 = vunpack.c.l.b16 %v50
    %v391 = vunpack.c.l.b16 %v51
    %v392 = vunpack.c.l.b16 %v52
    %v393 = vunpack.c.l.b16 %v53
    %v394 = vunpack.c.l.b16 %v54
    %v395 = vunpack.c.l.b16 %v55
    %v396 = vunpack.c.l.b16 %v56
    %v397 = vunpack.c.l.b16 %v57
    %v398 = vunpack.c.l.b16 %v58
    %v399 = vunpack.c.l.b16 %v59
    %v400 = vunpack.c.l.b16 %v60
    %v401 = vunpack.c.l.b16 %v61
    %v402 = vunpack.c.l.b16 %v62
    %v403 = vunpack.c.l.b16 %v63
    %v404 = vunpack.c.l.b16 %v64
    %v405 = vunpack.c.l.b16 %v65
    %v406 = vunpack.c.l.b16 %v66
    %v407 = vunpack.c.l.b16 %v67
    %v408 = vunpack.c.l.b16 %v68
    %v409 = vunpack.c.l.b16 %v69
    %v410 = vunpack.c.l.b16 %v70
    %v411 = vunpack.c.l.b16 %v71
    %v412 = vunpack.c.l.b16 %v72
    %v413 = vunpack.c.l.b16 %v73
    %v414 = vunpack.c.l.b16 %v74
    %v415 = vunpack.c.l.b16 %v75
    %v416 = vunpack.c.l.b16 %v76
    %v417 = vunpack.c.l.b16 %v77
    %v418 = vunpack.c.l.b16 %v78
    %v419 = vunpack.c.l.b16 %v79
    %v420 = vunpack.c.l.b16 %v80
    %v421 = vunpack.c.l.b16 %v81
    %v422 = vunpack.c.l.b16 %v82
    %v423 = vunpack.c.l.b16 %v83
    %v424 = vunpack.c.l.b16 %v84
    %v425 = vunpack.c.l.b16 %v85
    %v426 = vunpack.c.l.b16 %v86
    %v427 = vunpack.c.l.b16 %v87
    %v428 = vunpack.c.l.b16 %v88
    %v429 = vunpack.c.l.b16 %v89
    %v430 = vunpack.c.l.b16 %v90
    %v431 = vunpack.c.l.b16 %v91
    %v432 = vunpack.c.l.b16 %v92
    %v433 = vunpack.c.l.b16 %v93
    %v434 = vunpack.c.l.b16 %v94
    %v435 = vunpack.c.l.b16 %v95
    %v436 = vunpack.c.l.b16 %v96
    %v437 = vunpack.c.l.b16 %v97
    %v438 = vunpack.c.l.b16 %v98
    %v439 = vunpack.c.l.b16 %v99
    %v440 = vunpack.c.l.b16 %v100
    %v441 = vunpack.c.l.b16 %v101
    %v442 = vunpack.c.l.b16 %v102
    %v443 = vunpack.c.l.b16 %v103
    %v444 = vunpack.c.l.b16 %v104
    %v445 = vunpack.c.l.b16 %v105
    %v446 = vunpack.c.l.b16 %v106
    %v447 = vunpack.c.l.b16 %v107
    %v448 = vunpack.c.l.b16 %v108
    %v449 = vunpack.c.l.b16 %v109
    %v450 = vunpack.c.l.b16 %v110
    %v451 = vunpack.c.l.b16 %v111
    %v452 = vunpack.c.l.b16 %v112
    %v453 = vunpack.c.l.b16 %v113
    %v454 = vunpack.c.l.b16 %v114
    %v455 = vunpack.c.l.b16 %v115
    %v456 = vunpack.c.l.b16 %v116
    %v457 = vunpack.c.l.b16 %v117
    %v458 = vunpack.c.l.b16 %v118
    %v459 = vunpack.c.l.b16 %v119
    %v460 = vunpack.c.l.b16 %v120
    %v461 = vunpack.c.l.b16 %v121
    %v462 = vunpack.c.l.b16 %v122
    %v463 = vunpack.c.l.b16 %v123
    %v464 = vunpack.c.l.b16 %v124
    %v465 = vunpack.c.l.b16 %v125
    %v466 = vunpack.c.l.b16 %v126
    %v467 = vunpack.c.l.b16 %v127
    %v468 = vunpack.c.l.b16 %v128
    %v469 = vunpack.c.l.b16 %v129
    %v470 = vunpack.c.l.b16 %v130
    %v471 = vunpack.c.l.b16 %v131
    %v472 = vpack.c.b16 %v377, %v376
    %v473 = vpack.c.b16 %v379, %v378
    %v474 = vpack.c.b16 %v381, %v380
    %v475 = vpack.c.b16 %v383, %v382
    %v476 = vpack.c.b16 %v385, %v384
    %v477 = vpack.c.b16 %v387, %v386
    %v478 = vpack.c.b16 %v389, %v388
    %v479 = vpack.c.b16 %v391, %v390
    %v480 = vpack.c.b16 %v393, %v392
    %v481 = vpack.c.b16 %v395, %v394
    %v482 = vpack.c.b16 %v397, %v396
    %v483 = vpack.c.b16 %v399, %v398
    %v484 = vpack.c.b16 %v401, %v400
    %v485 = vpack.c.b16 %v403, %v402
    %v486 = vpack.c.b16 %v405, %v404
    %v487 = vpack.c.b16 %v407, %v406
    %v488 = vpack.c.b16 %v409, %v408
    %v489 = vpack.c.b16 %v411, %v410
    %v490 = vpack.c.b16 %v413, %v412
    %v491 = vpack.c.b16 %v415, %v414
    %v492 = vpack.c.b16 %v417, %v416
    %v493 = vpack.c.b16 %v419, %v418
    %v494 = vpack.c.b16 %v421, %v420
    %v495 = vpack.c.b16 %v423, %v422
    %v496 = vpack.c.b16 %v425, %v424
    %v497 = vpack.c.b16 %v427, %v426
    %v498 = vpack.c.b16 %v429, %v428
    %v499 = vpack.c.b16 %v431, %v430
    %v500 = vpack.c.b16 %v433, %v432
    %v501 = vpack.c.b16 %v435, %v434
    %v502 = vpack.c.b16 %v437, %v436
    %v503 = vpack.c.b16 %v439, %v438
    %v504 = vpack.c.b16 %v441, %v440
    %v505 = vpack.c.b16 %v443, %v442
    %v506 = vpack.c.b16 %v445, %v444
    %v507 = vpack.c.b16 %v447, %v446
    %v508 = vpack.c.b16 %v449, %v448
    %v509 = vpack.c.b16 %v451, %v450
    %v510 = vpack.c.b16 %v453, %v452
    %v511 = vpack.c.b16 %v455, %v454
    %v512 = vpack.c.b16 %v457, %v456
    %v513 = vpack.c.b16 %v459, %v458
    %v514 = vpack.c.b16 %v461, %v460
    %v515 = vpack.c.b16 %v463, %v462
    %v516 = vpack.c.b16 %v465, %v464
    %v517 = vpack.c.b16 %v467, %v466
    %v518 = vpack.c.b16 %v469, %v468
    %v519 = vpack.c.b16 %v471, %v470
    %568 = vmatprep.subr.bf16.mxu0 0
    %569 = vmatpush1.bf16.msra.mxu0 %v472
    %570 = vmatprep.subr.bf16.mxu0 0
    %571 = vmatpush1.bf16.msra.mxu0 %v473
    %572 = vmatprep.subr.bf16.mxu0 0
    %573 = vmatpush1.bf16.msra.mxu0 %v474
    %574 = vmatprep.subr.bf16.mxu0 0
    %575 = vmatpush1.bf16.msra.mxu0 %v475
    %576 = vmatprep.subr.bf16.mxu0 0
    %577 = vmatpush1.bf16.msra.mxu0 %v476
    %578 = vmatprep.subr.bf16.mxu0 0
    %579 = vmatpush1.bf16.msra.mxu0 %v477
    %580 = vmatprep.subr.bf16.mxu0 0
    %581 = vmatpush1.bf16.msra.mxu0 %v478
    %582 = vmatprep.subr.bf16.mxu0 0
    %583 = vmatpush1.bf16.msra.mxu0 %v479
    %584 = vmatprep.subr.bf16.mxu0 0
    %585 = vmatpush1.bf16.msra.mxu0 %v480
    %586 = vmatprep.subr.bf16.mxu0 0
    %587 = vmatpush1.bf16.msra.mxu0 %v481
    %588 = vmatprep.subr.bf16.mxu0 0
    %589 = vmatpush1.bf16.msra.mxu0 %v482
    %590 = vmatprep.subr.bf16.mxu0 0
    %591 = vmatpush1.bf16.msra.mxu0 %v483
    %592 = vmatprep.subr.bf16.mxu0 0
    %593 = vmatpush1.bf16.msra.mxu0 %v484
    %594 = vmatprep.subr.bf16.mxu0 0
    %595 = vmatpush1.bf16.msra.mxu0 %v485
    %596 = vmatprep.subr.bf16.mxu0 0
    %597 = vmatpush1.bf16.msra.mxu0 %v486
    %598 = vmatprep.subr.bf16.mxu0 0
    %599 = vmatpush1.bf16.msra.mxu0 %v487
    %600 = vmatprep.mubr.bf16.mxu0 %v269
    %601 = vmatmul.mubr.bf16.gmra.mrb[0].mxu0 %v268
    %v602 = vpop.f32.mrb[0].mxu0
    %v603 = vadd.f32 %v249, %v602
    %v604 = vpop.f32.mrb[0].mxu0
    %v605 = vpop.f32.mrb[0].mxu0
    %v606 = vadd.f32 %v249, %v605
    %v607 = vpop.f32.mrb[0].mxu0
    %608 = vdwg.mxu0
    %609 = vmatprep.subr.bf16.mxu0 0
    %610 = vmatpush1.bf16.msra.mxu0 %v488
    %611 = vmatprep.subr.bf16.mxu0 0
    %612 = vmatpush1.bf16.msra.mxu0 %v489
    %613 = vmatprep.subr.bf16.mxu0 0
    %614 = vmatpush1.bf16.msra.mxu0 %v490
    %615 = vmatprep.subr.bf16.mxu0 0
    %616 = vmatpush1.bf16.msra.mxu0 %v491
    %617 = vmatprep.subr.bf16.mxu0 0
    %618 = vmatpush1.bf16.msra.mxu0 %v492
    %619 = vmatprep.subr.bf16.mxu0 0
    %620 = vmatpush1.bf16.msra.mxu0 %v493
    %621 = vmatprep.subr.bf16.mxu0 0
    %622 = vmatpush1.bf16.msra.mxu0 %v494
    %623 = vmatprep.subr.bf16.mxu0 0
    %624 = vmatpush1.bf16.msra.mxu0 %v495
    %625 = vmatprep.subr.bf16.mxu0 0
    %626 = vmatpush1.bf16.msra.mxu0 %v496
    %627 = vmatprep.subr.bf16.mxu0 0
    %628 = vmatpush1.bf16.msra.mxu0 %v497
    %629 = vmatprep.subr.bf16.mxu0 0
    %630 = vmatpush1.bf16.msra.mxu0 %v498
    %631 = vmatprep.subr.bf16.mxu0 0
    %632 = vmatpush1.bf16.msra.mxu0 %v499
    %633 = vmatprep.subr.bf16.mxu0 0
    %634 = vmatpush1.bf16.msra.mxu0 %v500
    %635 = vmatprep.subr.bf16.mxu0 0
    %636 = vmatpush1.bf16.msra.mxu0 %v501
    %637 = vmatprep.subr.bf16.mxu0 0
    %638 = vmatpush1.bf16.msra.mxu0 %v502
    %639 = vmatprep.subr.bf16.mxu0 0
    %640 = vmatpush1.bf16.msra.mxu0 %v503
    %641 = vmatprep.mubr.bf16.mxu0 %v271
    %642 = vmatmul.mubr.bf16.gmra.mrb[0].mxu0 %v270
    %v643 = vpop.f32.mrb[0].mxu0
    %v644 = vadd.f32 %v603, %v643
    %v645 = vpop.f32.mrb[0].mxu0
    %v646 = vpop.f32.mrb[0].mxu0
    %v647 = vadd.f32 %v606, %v646
    %v648 = vpop.f32.mrb[0].mxu0
    %649 = vdwg.mxu0
    %650 = vmatprep.subr.bf16.mxu0 0
    %651 = vmatpush1.bf16.msra.mxu0 %v504
    %652 = vmatprep.subr.bf16.mxu0 0
    %653 = vmatpush1.bf16.msra.mxu0 %v505
    %654 = vmatprep.subr.bf16.mxu0 0
    %655 = vmatpush1.bf16.msra.mxu0 %v506
    %656 = vmatprep.subr.bf16.mxu0 0
    %657 = vmatpush1.bf16.msra.mxu0 %v507
    %658 = vmatprep.subr.bf16.mxu0 0
    %659 = vmatpush1.bf16.msra.mxu0 %v508
    %660 = vmatprep.subr.bf16.mxu0 0
    %661 = vmatpush1.bf16.msra.mxu0 %v509
    %662 = vmatprep.subr.bf16.mxu0 0
    %663 = vmatpush1.bf16.msra.mxu0 %v510
    %664 = vmatprep.subr.bf16.mxu0 0
    %665 = vmatpush1.bf16.msra.mxu0 %v511
    %666 = vmatprep.subr.bf16.mxu0 0
    %667 = vmatpush1.bf16.msra.mxu0 %v512
    %668 = vmatprep.subr.bf16.mxu0 0
    %669 = vmatpush1.bf16.msra.mxu0 %v513
    %670 = vmatprep.subr.bf16.mxu0 0
    %671 = vmatpush1.bf16.msra.mxu0 %v514
    %672 = vmatprep.subr.bf16.mxu0 0
    %673 = vmatpush1.bf16.msra.mxu0 %v515
    %674 = vmatprep.subr.bf16.mxu0 0
    %675 = vmatpush1.bf16.msra.mxu0 %v516
    %676 = vmatprep.subr.bf16.mxu0 0
    %677 = vmatpush1.bf16.msra.mxu0 %v517
    %678 = vmatprep.subr.bf16.mxu0 0
    %679 = vmatpush1.bf16.msra.mxu0 %v518
    %680 = vmatprep.subr.bf16.mxu0 0
    %681 = vmatpush1.bf16.msra.mxu0 %v519
    %682 = vmatprep.mubr.bf16.mxu0 %v273
    %683 = vmatmul.mubr.bf16.gmra.mrb[0].mxu0 %v272
    %v684 = vpop.f32.mrb[0].mxu0
    %v685 = vadd.f32 %v644, %v684
    %v686 = vpop.f32.mrb[0].mxu0
    %v687 = vpop.f32.mrb[0].mxu0
    %v688 = vadd.f32 %v647, %v687
    %v689 = vpop.f32.mrb[0].mxu0
    %690 = vdwg.mxu0
    %v691 = vpack.c.bf16 %v688, %v685
    %v708 = vunpack.c.l.b16 %v132
    %v709 = vunpack.c.l.b16 %v133
    %v710 = vunpack.c.l.b16 %v134
    %v711 = vunpack.c.l.b16 %v135
    %v712 = vunpack.c.l.b16 %v136
    %v713 = vunpack.c.l.b16 %v137
    %v714 = vunpack.c.l.b16 %v138
    %v715 = vunpack.c.l.b16 %v139
    %v716 = vunpack.c.l.b16 %v140
    %v717 = vunpack.c.l.b16 %v141
    %v718 = vunpack.c.l.b16 %v142
    %v719 = vunpack.c.l.b16 %v143
    %v720 = vunpack.c.l.b16 %v144
    %v721 = vunpack.c.l.b16 %v145
    %v722 = vunpack.c.l.b16 %v146
    %v723 = vunpack.c.l.b16 %v147
    %v724 = vpack.c.b16 %v709, %v708
    %v725 = vpack.c.b16 %v711, %v710
    %v726 = vpack.c.b16 %v713, %v712
    %v727 = vpack.c.b16 %v715, %v714
    %v728 = vpack.c.b16 %v717, %v716
    %v729 = vpack.c.b16 %v719, %v718
    %v730 = vpack.c.b16 %v721, %v720
    %v731 = vpack.c.b16 %v723, %v722
    %740 = vmatprep.subr.bf16.mxu0 0
    %741 = vmatpush1.bf16.msra.mxu0 %v724
    %742 = vmatprep.subr.bf16.mxu0 0
    %743 = vmatpush1.bf16.msra.mxu0 %v725
    %744 = vmatprep.subr.bf16.mxu0 0
    %745 = vmatpush1.bf16.msra.mxu0 %v726
    %746 = vmatprep.subr.bf16.mxu0 0
    %747 = vmatpush1.bf16.msra.mxu0 %v727
    %748 = vmatprep.subr.bf16.mxu0 0
    %749 = vmatpush1.bf16.msra.mxu0 %v728
    %750 = vmatprep.subr.bf16.mxu0 0
    %751 = vmatpush1.bf16.msra.mxu0 %v729
    %752 = vmatprep.subr.bf16.mxu0 0
    %753 = vmatpush1.bf16.msra.mxu0 %v730
    %754 = vmatprep.subr.bf16.mxu0 0
    %755 = vmatpush1.bf16.msra.mxu0 %v731
    %756 = vmatprep.subr.bf16.mxu0 0
    %757 = vmatpush1.bf16.msra.mxu0 0
    %758 = vmatprep.subr.bf16.mxu0 0
    %759 = vmatpush1.bf16.msra.mxu0 0
    %760 = vmatprep.subr.bf16.mxu0 0
    %761 = vmatpush1.bf16.msra.mxu0 0
    %762 = vmatprep.subr.bf16.mxu0 0
    %763 = vmatpush1.bf16.msra.mxu0 0
    %764 = vmatprep.subr.bf16.mxu0 0
    %765 = vmatpush1.bf16.msra.mxu0 0
    %766 = vmatprep.subr.bf16.mxu0 0
    %767 = vmatpush1.bf16.msra.mxu0 0
    %768 = vmatprep.subr.bf16.mxu0 0
    %769 = vmatpush1.bf16.msra.mxu0 0
    %770 = vmatprep.subr.bf16.mxu0 0
    %771 = vmatpush1.bf16.msra.mxu0 0
    %772 = vmatprep.mubr.bf16.mxu0 0
    %773 = vmatmul.mubr.bf16.gmra.mrb[0].mxu0 %v691
    %v774 = vpop.f32.mrb[0].mxu0
    %v775 = vadd.f32 0.0, %v774
    %v776 = vpop.f32.mrb[0].mxu0
    %v777 = vpop.f32.mrb[0].mxu0
    %v778 = vadd.f32 0.0, %v777
    %v779 = vpop.f32.mrb[0].mxu0
    %780 = vdwg.mxu0
    %v781 = vsub.f32 %v685, %v775
    %v782 = vsub.f32 %v688, %v778
    %v783 = vmul.f32 %v781, %v781
    %v784 = vmul.f32 %v782, %v782
    %v785 = vpack.c.bf16 %v784, %v783
    %786 = vmatprep.subr.bf16.mxu0 0
    %787 = vmatpush1.bf16.msra.mxu0 %v724
    %788 = vmatprep.subr.bf16.mxu0 0
    %789 = vmatpush1.bf16.msra.mxu0 %v725
    %790 = vmatprep.subr.bf16.mxu0 0
    %791 = vmatpush1.bf16.msra.mxu0 %v726
    %792 = vmatprep.subr.bf16.mxu0 0
    %793 = vmatpush1.bf16.msra.mxu0 %v727
    %794 = vmatprep.subr.bf16.mxu0 0
    %795 = vmatpush1.bf16.msra.mxu0 %v728
    %796 = vmatprep.subr.bf16.mxu0 0
    %797 = vmatpush1.bf16.msra.mxu0 %v729
    %798 = vmatprep.subr.bf16.mxu0 0
    %799 = vmatpush1.bf16.msra.mxu0 %v730
    %800 = vmatprep.subr.bf16.mxu0 0
    %801 = vmatpush1.bf16.msra.mxu0 %v731
    %802 = vmatprep.subr.bf16.mxu0 0
    %803 = vmatpush1.bf16.msra.mxu0 0
    %804 = vmatprep.subr.bf16.mxu0 0
    %805 = vmatpush1.bf16.msra.mxu0 0
    %806 = vmatprep.subr.bf16.mxu0 0
    %807 = vmatpush1.bf16.msra.mxu0 0
    %808 = vmatprep.subr.bf16.mxu0 0
    %809 = vmatpush1.bf16.msra.mxu0 0
    %810 = vmatprep.subr.bf16.mxu0 0
    %811 = vmatpush1.bf16.msra.mxu0 0
    %812 = vmatprep.subr.bf16.mxu0 0
    %813 = vmatpush1.bf16.msra.mxu0 0
    %814 = vmatprep.subr.bf16.mxu0 0
    %815 = vmatpush1.bf16.msra.mxu0 0
    %816 = vmatprep.subr.bf16.mxu0 0
    %817 = vmatpush1.bf16.msra.mxu0 0
    %818 = vmatprep.mubr.bf16.mxu0 0
    %819 = vmatmul.mubr.bf16.gmra.mrb[0].mxu0 %v785
    %v820 = vpop.f32.mrb[0].mxu0
    %v821 = vadd.f32 1e-06, %v820
    %v822 = vpop.f32.mrb[0].mxu0
    %v823 = vpop.f32.mrb[0].mxu0
    %v824 = vadd.f32 1e-06, %v823
    %v825 = vpop.f32.mrb[0].mxu0
    %826 = vdwg.mxu0
    %v827 = vrsqrt.pop %v821
    %v828 = vrsqrt.pop %v824
    %v829 = vmul.f32 %v781, %v827
    %v830 = vmul.f32 %v782, %v828
    %v831 = vlaneseq
    %v832 = vshrl.u32 %v831, 7
    %v833 = vsub.s32 0, %v832
    %v834 = vrot.slane %v171, %v833
    %v835 = vmul.f32 %v829, %v834
    %v836 = vmul.f32 %v830, %v834
    %v837 = vlaneseq
    %v838 = vshrl.u32 %v837, 7
    %v839 = vsub.s32 0, %v838
    %v840 = vrot.slane %v172, %v839
    %v841 = vadd.f32 %v835, %v840
    %v842 = vadd.f32 %v836, %v840
    %v843 = vlaneseq
    %v844 = vshrl.u32 %v843, 7
    %v845 = vsub.s32 0, %v844
    %v846 = vrot.slane %v239, %v845
    %847 = vmatprep.subr.mxu0 0.0
    %848 = vmatpush1.msra.mxu0 %v221
    %849 = vmatprep.subr.mxu0 0.0
    %850 = vmatpush1.msra.mxu0 %v222
    %851 = vmatprep.subr.mxu0 0.0
    %852 = vmatpush1.msra.mxu0 %v223
    %853 = vmatprep.subr.mxu0 0.0
    %854 = vmatpush1.msra.mxu0 %v224
    %855 = vmatprep.subr.mxu0 0.0
    %856 = vmatpush1.msra.mxu0 %v225
    %857 = vmatprep.subr.mxu0 0.0
    %858 = vmatpush1.msra.mxu0 %v226
    %859 = vmatprep.subr.mxu0 0.0
    %860 = vmatpush1.msra.mxu0 %v227
    %861 = vmatprep.subr.mxu0 0.0
    %862 = vmatpush1.msra.mxu0 %v228
    %863 = vmatprep.subr.mxu0 0.0
    %864 = vmatpush1.msra.mxu0 %v229
    %865 = vmatprep.subr.mxu0 0.0
    %866 = vmatpush1.msra.mxu0 %v230
    %867 = vmatprep.subr.mxu0 0.0
    %868 = vmatpush1.msra.mxu0 %v231
    %869 = vmatprep.subr.mxu0 0.0
    %870 = vmatpush1.msra.mxu0 %v232
    %871 = vmatprep.subr.mxu0 0.0
    %872 = vmatpush1.msra.mxu0 %v233
    %873 = vmatprep.subr.mxu0 0.0
    %874 = vmatpush1.msra.mxu0 %v234
    %875 = vmatprep.subr.mxu0 0.0
    %876 = vmatpush1.msra.mxu0 %v235
    %877 = vmatprep.subr.mxu0 0.0
    %878 = vmatpush1.msra.mxu0 %v236
    %879 = vmatprep.subr.mxu0 0.0
    %880 = vmatpush1.msra.mxu0 0.0
    %881 = vmatprep.subr.mxu0 0.0
    %882 = vmatpush1.msra.mxu0 0.0
    %883 = vmatprep.subr.mxu0 0.0
    %884 = vmatpush1.msra.mxu0 0.0
    %885 = vmatprep.subr.mxu0 0.0
    %886 = vmatpush1.msra.mxu0 0.0
    %887 = vmatprep.subr.mxu0 0.0
    %888 = vmatpush1.msra.mxu0 0.0
    %889 = vmatprep.subr.mxu0 0.0
    %890 = vmatpush1.msra.mxu0 0.0
    %891 = vmatprep.subr.mxu0 0.0
    %892 = vmatpush1.msra.mxu0 0.0
    %893 = vmatprep.subr.mxu0 0.0
    %894 = vmatpush1.msra.mxu0 0.0
    %895 = vmatprep.subr.mxu0 0.0
    %896 = vmatpush1.msra.mxu0 0.0
    %897 = vmatprep.subr.mxu0 0.0
    %898 = vmatpush1.msra.mxu0 0.0
    %899 = vmatprep.subr.mxu0 0.0
    %900 = vmatpush1.msra.mxu0 0.0
    %901 = vmatprep.subr.mxu0 0.0
    %902 = vmatpush1.msra.mxu0 0.0
    %903 = vmatprep.subr.mxu0 0.0
    %904 = vmatpush1.msra.mxu0 0.0
    %905 = vmatprep.subr.mxu0 0.0
    %906 = vmatpush1.msra.mxu0 0.0
    %907 = vmatprep.subr.mxu0 0.0
    %908 = vmatpush1.msra.mxu0 0.0
    %909 = vmatprep.subr.mxu0 0.0
    %910 = vmatpush1.msra.mxu0 0.0
    %911 = vmatprep.mubr.f32.mxu0 0.0
    %912 = vmatmul.mubr.f32.gmra.mrb[0].mxu0 %v841
    %v913 = vpop.f32.mrb[0].mxu0
    %v914 = vadd.f32 %v846, %v913
    %v915 = vpop.f32.mrb[0].mxu0
    %916 = vmatprep.mubr.f32.mxu0 0.0
    %917 = vmatmul.mubr.f32.gmra.mrb[0].mxu0 %v842
    %v918 = vpop.f32.mrb[0].mxu0
    %v919 = vadd.f32 %v846, %v918
    %v920 = vpop.f32.mrb[0].mxu0
    %921 = vdwg.mxu0
    %v922 = vmul.f32 %v914, 1.442695
    %v923 = vpow.pop %v922
    %v924 = vmul.f32 %v919, 1.442695
    %v925 = vpow.pop %v924
    %vm926 = vcmask 130048
    %v928 = vsel %vm926, %v923, 0
    %v931 = vsel %vm926, %v925, 0
    %933 = vmatprep.subr.mxu0 0.0
    %934 = vmatpush1.msra.mxu0 %v237
    %935 = vmatprep.subr.mxu0 0.0
    %936 = vmatpush1.msra.mxu0 %v238
    %937 = vmatprep.subr.mxu0 0.0
    %938 = vmatpush1.msra.mxu0 0.0
    %939 = vmatprep.subr.mxu0 0.0
    %940 = vmatpush1.msra.mxu0 0.0
    %941 = vmatprep.subr.mxu0 0.0
    %942 = vmatpush1.msra.mxu0 0.0
    %943 = vmatprep.subr.mxu0 0.0
    %944 = vmatpush1.msra.mxu0 0.0
    %945 = vmatprep.subr.mxu0 0.0
    %946 = vmatpush1.msra.mxu0 0.0
    %947 = vmatprep.subr.mxu0 0.0
    %948 = vmatpush1.msra.mxu0 0.0
    %949 = vmatprep.subr.mxu0 0.0
    %950 = vmatpush1.msra.mxu0 0.0
    %951 = vmatprep.subr.mxu0 0.0
    %952 = vmatpush1.msra.mxu0 0.0
    %953 = vmatprep.subr.mxu0 0.0
    %954 = vmatpush1.msra.mxu0 0.0
    %955 = vmatprep.subr.mxu0 0.0
    %956 = vmatpush1.msra.mxu0 0.0
    %957 = vmatprep.subr.mxu0 0.0
    %958 = vmatpush1.msra.mxu0 0.0
    %959 = vmatprep.subr.mxu0 0.0
    %960 = vmatpush1.msra.mxu0 0.0
    %961 = vmatprep.subr.mxu0 0.0
    %962 = vmatpush1.msra.mxu0 0.0
    %963 = vmatprep.subr.mxu0 0.0
    %964 = vmatpush1.msra.mxu0 0.0
    %965 = vmatprep.subr.mxu0 0.0
    %966 = vmatpush1.msra.mxu0 0.0
    %967 = vmatprep.subr.mxu0 0.0
    %968 = vmatpush1.msra.mxu0 0.0
    %969 = vmatprep.subr.mxu0 0.0
    %970 = vmatpush1.msra.mxu0 0.0
    %971 = vmatprep.subr.mxu0 0.0
    %972 = vmatpush1.msra.mxu0 0.0
    %973 = vmatprep.subr.mxu0 0.0
    %974 = vmatpush1.msra.mxu0 0.0
    %975 = vmatprep.subr.mxu0 0.0
    %976 = vmatpush1.msra.mxu0 0.0
    %977 = vmatprep.subr.mxu0 0.0
    %978 = vmatpush1.msra.mxu0 0.0
    %979 = vmatprep.subr.mxu0 0.0
    %980 = vmatpush1.msra.mxu0 0.0
    %981 = vmatprep.subr.mxu0 0.0
    %982 = vmatpush1.msra.mxu0 0.0
    %983 = vmatprep.subr.mxu0 0.0
    %984 = vmatpush1.msra.mxu0 0.0
    %985 = vmatprep.subr.mxu0 0.0
    %986 = vmatpush1.msra.mxu0 0.0
    %987 = vmatprep.subr.mxu0 0.0
    %988 = vmatpush1.msra.mxu0 0.0
    %989 = vmatprep.subr.mxu0 0.0
    %990 = vmatpush1.msra.mxu0 0.0
    %991 = vmatprep.subr.mxu0 0.0
    %992 = vmatpush1.msra.mxu0 0.0
    %993 = vmatprep.subr.mxu0 0.0
    %994 = vmatpush1.msra.mxu0 0.0
    %995 = vmatprep.subr.mxu0 0.0
    %996 = vmatpush1.msra.mxu0 0.0
    %997 = vmatprep.mubr.f32.mxu0 0.0
    %998 = vmatmul.mubr.f32.gmra.mrb[0].mxu0 %v928
    %v999 = vpop.f32.mrb[0].mxu0
    %v1000 = vadd.f32 1.0, %v999
    %v1001 = vpop.f32.mrb[0].mxu0
    %1002 = vmatprep.mubr.f32.mxu0 0.0
    %1003 = vmatmul.mubr.f32.gmra.mrb[0].mxu0 %v931
    %v1004 = vpop.f32.mrb[0].mxu0
    %v1005 = vadd.f32 1.0, %v1004
    %v1006 = vpop.f32.mrb[0].mxu0
    %1007 = vdwg.mxu0
    %v1008 = vrcp.pop %v1000
    %v1009 = vmul.f32 1.0, %v1008
    %v1010 = vrcp.pop %v1005
    %v1011 = vmul.f32 1.0, %v1010
    %v1012 = vpack.c.bf16 %v842, %v841
    %v1013 = vlaneseq
    %v1014 = vshrl.u32 %v1013, 7
    %v1015 = vsub.s32 0, %v1014
    %v1016 = vrot.slane %v173, %v1015
    %v1033 = vunpack.c.l.b16 %v148
    %v1034 = vunpack.c.l.b16 %v149
    %v1035 = vunpack.c.l.b16 %v150
    %v1036 = vunpack.c.l.b16 %v151
    %v1037 = vunpack.c.l.b16 %v152
    %v1038 = vunpack.c.l.b16 %v153
    %v1039 = vunpack.c.l.b16 %v154
    %v1040 = vunpack.c.l.b16 %v155
    %v1041 = vunpack.c.l.b16 %v156
    %v1042 = vunpack.c.l.b16 %v157
    %v1043 = vunpack.c.l.b16 %v158
    %v1044 = vunpack.c.l.b16 %v159
    %v1045 = vunpack.c.l.b16 %v160
    %v1046 = vunpack.c.l.b16 %v161
    %v1047 = vunpack.c.l.b16 %v162
    %v1048 = vunpack.c.l.b16 %v163
    %v1049 = vpack.c.b16 %v1034, %v1033
    %v1050 = vpack.c.b16 %v1036, %v1035
    %v1051 = vpack.c.b16 %v1038, %v1037
    %v1052 = vpack.c.b16 %v1040, %v1039
    %v1053 = vpack.c.b16 %v1042, %v1041
    %v1054 = vpack.c.b16 %v1044, %v1043
    %v1055 = vpack.c.b16 %v1046, %v1045
    %v1056 = vpack.c.b16 %v1048, %v1047
    %1065 = vmatprep.subr.bf16.mxu0 0
    %1066 = vmatpush1.bf16.msra.mxu0 %v1049
    %1067 = vmatprep.subr.bf16.mxu0 0
    %1068 = vmatpush1.bf16.msra.mxu0 %v1050
    %1069 = vmatprep.subr.bf16.mxu0 0
    %1070 = vmatpush1.bf16.msra.mxu0 %v1051
    %1071 = vmatprep.subr.bf16.mxu0 0
    %1072 = vmatpush1.bf16.msra.mxu0 %v1052
    %1073 = vmatprep.subr.bf16.mxu0 0
    %1074 = vmatpush1.bf16.msra.mxu0 %v1053
    %1075 = vmatprep.subr.bf16.mxu0 0
    %1076 = vmatpush1.bf16.msra.mxu0 %v1054
    %1077 = vmatprep.subr.bf16.mxu0 0
    %1078 = vmatpush1.bf16.msra.mxu0 %v1055
    %1079 = vmatprep.subr.bf16.mxu0 0
    %1080 = vmatpush1.bf16.msra.mxu0 %v1056
    %1081 = vmatprep.subr.bf16.mxu0 0
    %1082 = vmatpush1.bf16.msra.mxu0 0
    %1083 = vmatprep.subr.bf16.mxu0 0
    %1084 = vmatpush1.bf16.msra.mxu0 0
    %1085 = vmatprep.subr.bf16.mxu0 0
    %1086 = vmatpush1.bf16.msra.mxu0 0
    %1087 = vmatprep.subr.bf16.mxu0 0
    %1088 = vmatpush1.bf16.msra.mxu0 0
    %1089 = vmatprep.subr.bf16.mxu0 0
    %1090 = vmatpush1.bf16.msra.mxu0 0
    %1091 = vmatprep.subr.bf16.mxu0 0
    %1092 = vmatpush1.bf16.msra.mxu0 0
    %1093 = vmatprep.subr.bf16.mxu0 0
    %1094 = vmatpush1.bf16.msra.mxu0 0
    %1095 = vmatprep.subr.bf16.mxu0 0
    %1096 = vmatpush1.bf16.msra.mxu0 0
    %1097 = vmatprep.mubr.bf16.mxu0 0
    %1098 = vmatmul.mubr.bf16.gmra.mrb[0].mxu0 %v1012
    %v1099 = vpop.f32.mrb[0].mxu0
    %v1100 = vadd.f32 %v1016, %v1099
    %v1101 = vpop.f32.mrb[0].mxu0
    %v1102 = vpop.f32.mrb[0].mxu0
    %v1103 = vadd.f32 %v1016, %v1102
    %v1104 = vpop.f32.mrb[0].mxu0
    %1105 = vdwg.mxu0
    %v1106 = vmul.f32 %v923, %v1009
    %v1107 = vmul.f32 %v925, %v1011
    %v1109 = vsel %vm926, %v1106, 0
    %v1112 = vsel %vm926, %v1107, 0
    %1114 = vmatprep.subr.mxu0 0.0
    %1115 = vmatpush1.msra.mxu0 %v164
    %1116 = vmatprep.subr.mxu0 0.0
    %1117 = vmatpush1.msra.mxu0 %v165
    %1118 = vmatprep.subr.mxu0 0.0
    %1119 = vmatpush1.msra.mxu0 0.0
    %1120 = vmatprep.subr.mxu0 0.0
    %1121 = vmatpush1.msra.mxu0 0.0
    %1122 = vmatprep.subr.mxu0 0.0
    %1123 = vmatpush1.msra.mxu0 0.0
    %1124 = vmatprep.subr.mxu0 0.0
    %1125 = vmatpush1.msra.mxu0 0.0
    %1126 = vmatprep.subr.mxu0 0.0
    %1127 = vmatpush1.msra.mxu0 0.0
    %1128 = vmatprep.subr.mxu0 0.0
    %1129 = vmatpush1.msra.mxu0 0.0
    %1130 = vmatprep.subr.mxu0 0.0
    %1131 = vmatpush1.msra.mxu0 0.0
    %1132 = vmatprep.subr.mxu0 0.0
    %1133 = vmatpush1.msra.mxu0 0.0
    %1134 = vmatprep.subr.mxu0 0.0
    %1135 = vmatpush1.msra.mxu0 0.0
    %1136 = vmatprep.subr.mxu0 0.0
    %1137 = vmatpush1.msra.mxu0 0.0
    %1138 = vmatprep.subr.mxu0 0.0
    %1139 = vmatpush1.msra.mxu0 0.0
    %1140 = vmatprep.subr.mxu0 0.0
    %1141 = vmatpush1.msra.mxu0 0.0
    %1142 = vmatprep.subr.mxu0 0.0
    %1143 = vmatpush1.msra.mxu0 0.0
    %1144 = vmatprep.subr.mxu0 0.0
    %1145 = vmatpush1.msra.mxu0 0.0
    %1146 = vmatprep.subr.mxu0 0.0
    %1147 = vmatpush1.msra.mxu0 0.0
    %1148 = vmatprep.subr.mxu0 0.0
    %1149 = vmatpush1.msra.mxu0 0.0
    %1150 = vmatprep.subr.mxu0 0.0
    %1151 = vmatpush1.msra.mxu0 0.0
    %1152 = vmatprep.subr.mxu0 0.0
    %1153 = vmatpush1.msra.mxu0 0.0
    %1154 = vmatprep.subr.mxu0 0.0
    %1155 = vmatpush1.msra.mxu0 0.0
    %1156 = vmatprep.subr.mxu0 0.0
    %1157 = vmatpush1.msra.mxu0 0.0
    %1158 = vmatprep.subr.mxu0 0.0
    %1159 = vmatpush1.msra.mxu0 0.0
    %1160 = vmatprep.subr.mxu0 0.0
    %1161 = vmatpush1.msra.mxu0 0.0
    %1162 = vmatprep.subr.mxu0 0.0
    %1163 = vmatpush1.msra.mxu0 0.0
    %1164 = vmatprep.subr.mxu0 0.0
    %1165 = vmatpush1.msra.mxu0 0.0
    %1166 = vmatprep.subr.mxu0 0.0
    %1167 = vmatpush1.msra.mxu0 0.0
    %1168 = vmatprep.subr.mxu0 0.0
    %1169 = vmatpush1.msra.mxu0 0.0
    %1170 = vmatprep.subr.mxu0 0.0
    %1171 = vmatpush1.msra.mxu0 0.0
    %1172 = vmatprep.subr.mxu0 0.0
    %1173 = vmatpush1.msra.mxu0 0.0
    %1174 = vmatprep.subr.mxu0 0.0
    %1175 = vmatpush1.msra.mxu0 0.0
    %1176 = vmatprep.subr.mxu0 0.0
    %1177 = vmatpush1.msra.mxu0 0.0
    %1178 = vmatprep.mubr.f32.mxu0 0.0
    %1179 = vmatmul.mubr.f32.gmra.mrb[0].mxu0 %v1109
    %v1180 = vpop.f32.mrb[0].mxu0
    %v1181 = vadd.f32 0.0, %v1180
    %v1182 = vpop.f32.mrb[0].mxu0
    %1183 = vmatprep.mubr.f32.mxu0 0.0
    %1184 = vmatmul.mubr.f32.gmra.mrb[0].mxu0 %v1112
    %v1185 = vpop.f32.mrb[0].mxu0
    %v1186 = vadd.f32 0.0, %v1185
    %v1187 = vpop.f32.mrb[0].mxu0
    %1188 = vdwg.mxu0
    %v1189 = vmul.f32 %v1181, %v1100
    %v1190 = vmul.f32 %v1186, %v1103
    %v1192 = vsel %vm926, %v1009, 0
    %v1195 = vsel %vm926, %v1011, 0
    %1197 = vmatprep.subr.mxu0 0.0
    %1198 = vmatpush1.msra.mxu0 %v191
    %1199 = vmatprep.subr.mxu0 0.0
    %1200 = vmatpush1.msra.mxu0 %v192
    %1201 = vmatprep.subr.mxu0 0.0
    %1202 = vmatpush1.msra.mxu0 0.0
    %1203 = vmatprep.subr.mxu0 0.0
    %1204 = vmatpush1.msra.mxu0 0.0
    %1205 = vmatprep.subr.mxu0 0.0
    %1206 = vmatpush1.msra.mxu0 0.0
    %1207 = vmatprep.subr.mxu0 0.0
    %1208 = vmatpush1.msra.mxu0 0.0
    %1209 = vmatprep.subr.mxu0 0.0
    %1210 = vmatpush1.msra.mxu0 0.0
    %1211 = vmatprep.subr.mxu0 0.0
    %1212 = vmatpush1.msra.mxu0 0.0
    %1213 = vmatprep.subr.mxu0 0.0
    %1214 = vmatpush1.msra.mxu0 0.0
    %1215 = vmatprep.subr.mxu0 0.0
    %1216 = vmatpush1.msra.mxu0 0.0
    %1217 = vmatprep.subr.mxu0 0.0
    %1218 = vmatpush1.msra.mxu0 0.0
    %1219 = vmatprep.subr.mxu0 0.0
    %1220 = vmatpush1.msra.mxu0 0.0
    %1221 = vmatprep.subr.mxu0 0.0
    %1222 = vmatpush1.msra.mxu0 0.0
    %1223 = vmatprep.subr.mxu0 0.0
    %1224 = vmatpush1.msra.mxu0 0.0
    %1225 = vmatprep.subr.mxu0 0.0
    %1226 = vmatpush1.msra.mxu0 0.0
    %1227 = vmatprep.subr.mxu0 0.0
    %1228 = vmatpush1.msra.mxu0 0.0
    %1229 = vmatprep.subr.mxu0 0.0
    %1230 = vmatpush1.msra.mxu0 0.0
    %1231 = vmatprep.subr.mxu0 0.0
    %1232 = vmatpush1.msra.mxu0 0.0
    %1233 = vmatprep.subr.mxu0 0.0
    %1234 = vmatpush1.msra.mxu0 0.0
    %1235 = vmatprep.subr.mxu0 0.0
    %1236 = vmatpush1.msra.mxu0 0.0
    %1237 = vmatprep.subr.mxu0 0.0
    %1238 = vmatpush1.msra.mxu0 0.0
    %1239 = vmatprep.subr.mxu0 0.0
    %1240 = vmatpush1.msra.mxu0 0.0
    %1241 = vmatprep.subr.mxu0 0.0
    %1242 = vmatpush1.msra.mxu0 0.0
    %1243 = vmatprep.subr.mxu0 0.0
    %1244 = vmatpush1.msra.mxu0 0.0
    %1245 = vmatprep.subr.mxu0 0.0
    %1246 = vmatpush1.msra.mxu0 0.0
    %1247 = vmatprep.subr.mxu0 0.0
    %1248 = vmatpush1.msra.mxu0 0.0
    %1249 = vmatprep.subr.mxu0 0.0
    %1250 = vmatpush1.msra.mxu0 0.0
    %1251 = vmatprep.subr.mxu0 0.0
    %1252 = vmatpush1.msra.mxu0 0.0
    %1253 = vmatprep.subr.mxu0 0.0
    %1254 = vmatpush1.msra.mxu0 0.0
    %1255 = vmatprep.subr.mxu0 0.0
    %1256 = vmatpush1.msra.mxu0 0.0
    %1257 = vmatprep.subr.mxu0 0.0
    %1258 = vmatpush1.msra.mxu0 0.0
    %1259 = vmatprep.subr.mxu0 0.0
    %1260 = vmatpush1.msra.mxu0 0.0
    %1261 = vmatprep.mubr.f32.mxu0 0.0
    %1262 = vmatmul.mubr.f32.gmra.mrb[0].mxu0 %v1192
    %v1263 = vpop.f32.mrb[0].mxu0
    %v1264 = vadd.f32 0.0, %v1263
    %v1265 = vpop.f32.mrb[0].mxu0
    %1266 = vmatprep.mubr.f32.mxu0 0.0
    %1267 = vmatmul.mubr.f32.gmra.mrb[0].mxu0 %v1195
    %v1268 = vpop.f32.mrb[0].mxu0
    %v1269 = vadd.f32 0.0, %v1268
    %v1270 = vpop.f32.mrb[0].mxu0
    %1271 = vdwg.mxu0
    %v1272 = vlaneseq
    %v1273 = vshrl.u32 %v1272, 7
    %v1274 = vsub.s32 0, %v1273
    %v1275 = vrot.slane %v215, %v1274
    %v1276 = vmul.f32 %v1264, %v1275
    %v1277 = vmul.f32 %v1269, %v1275
    %1278 = vmatprep.subr.mxu0 0.0
    %1279 = vmatpush1.msra.mxu0 %v175
    %1280 = vmatprep.subr.mxu0 0.0
    %1281 = vmatpush1.msra.mxu0 %v176
    %1282 = vmatprep.subr.mxu0 0.0
    %1283 = vmatpush1.msra.mxu0 %v177
    %1284 = vmatprep.subr.mxu0 0.0
    %1285 = vmatpush1.msra.mxu0 %v178
    %1286 = vmatprep.subr.mxu0 0.0
    %1287 = vmatpush1.msra.mxu0 %v179
    %1288 = vmatprep.subr.mxu0 0.0
    %1289 = vmatpush1.msra.mxu0 %v180
    %1290 = vmatprep.subr.mxu0 0.0
    %1291 = vmatpush1.msra.mxu0 %v181
    %1292 = vmatprep.subr.mxu0 0.0
    %1293 = vmatpush1.msra.mxu0 %v182
    %1294 = vmatprep.subr.mxu0 0.0
    %1295 = vmatpush1.msra.mxu0 %v183
    %1296 = vmatprep.subr.mxu0 0.0
    %1297 = vmatpush1.msra.mxu0 %v184
    %1298 = vmatprep.subr.mxu0 0.0
    %1299 = vmatpush1.msra.mxu0 %v185
    %1300 = vmatprep.subr.mxu0 0.0
    %1301 = vmatpush1.msra.mxu0 %v186
    %1302 = vmatprep.subr.mxu0 0.0
    %1303 = vmatpush1.msra.mxu0 %v187
    %1304 = vmatprep.subr.mxu0 0.0
    %1305 = vmatpush1.msra.mxu0 %v188
    %1306 = vmatprep.subr.mxu0 0.0
    %1307 = vmatpush1.msra.mxu0 %v189
    %1308 = vmatprep.subr.mxu0 0.0
    %1309 = vmatpush1.msra.mxu0 %v190
    %1310 = vmatprep.subr.mxu0 0.0
    %1311 = vmatpush1.msra.mxu0 0.0
    %1312 = vmatprep.subr.mxu0 0.0
    %1313 = vmatpush1.msra.mxu0 0.0
    %1314 = vmatprep.subr.mxu0 0.0
    %1315 = vmatpush1.msra.mxu0 0.0
    %1316 = vmatprep.subr.mxu0 0.0
    %1317 = vmatpush1.msra.mxu0 0.0
    %1318 = vmatprep.subr.mxu0 0.0
    %1319 = vmatpush1.msra.mxu0 0.0
    %1320 = vmatprep.subr.mxu0 0.0
    %1321 = vmatpush1.msra.mxu0 0.0
    %1322 = vmatprep.subr.mxu0 0.0
    %1323 = vmatpush1.msra.mxu0 0.0
    %1324 = vmatprep.subr.mxu0 0.0
    %1325 = vmatpush1.msra.mxu0 0.0
    %1326 = vmatprep.subr.mxu0 0.0
    %1327 = vmatpush1.msra.mxu0 0.0
    %1328 = vmatprep.subr.mxu0 0.0
    %1329 = vmatpush1.msra.mxu0 0.0
    %1330 = vmatprep.subr.mxu0 0.0
    %1331 = vmatpush1.msra.mxu0 0.0
    %1332 = vmatprep.subr.mxu0 0.0
    %1333 = vmatpush1.msra.mxu0 0.0
    %1334 = vmatprep.subr.mxu0 0.0
    %1335 = vmatpush1.msra.mxu0 0.0
    %1336 = vmatprep.subr.mxu0 0.0
    %1337 = vmatpush1.msra.mxu0 0.0
    %1338 = vmatprep.subr.mxu0 0.0
    %1339 = vmatpush1.msra.mxu0 0.0
    %1340 = vmatprep.subr.mxu0 0.0
    %1341 = vmatpush1.msra.mxu0 0.0
    %1342 = vmatprep.mubr.f32.mxu0 0.0
    %1343 = vmatmul.mubr.f32.gmra.mrb[0].mxu0 %v1189
    %v1344 = vpop.f32.mrb[0].mxu0
    %v1345 = vadd.f32 %v1276, %v1344
    %v1346 = vpop.f32.mrb[0].mxu0
    %1347 = vmatprep.mubr.f32.mxu0 0.0
    %1348 = vmatmul.mubr.f32.gmra.mrb[0].mxu0 %v1190
    %v1349 = vpop.f32.mrb[0].mxu0
    %v1350 = vadd.f32 %v1277, %v1349
    %v1351 = vpop.f32.mrb[0].mxu0
    %1352 = vdwg.mxu0
    %vm1353 = vcmask 261120
    %v1355 = vsel %vm1353, %v1345, 0
    %v1358 = vsel %vm1353, %v1350, 0
    %1360 = vmatprep.subr.mxu0 0.0
    %1361 = vmatpush1.msra.mxu0 %v193
    %1362 = vmatprep.subr.mxu0 0.0
    %1363 = vmatpush1.msra.mxu0 %v194
    %1364 = vmatprep.subr.mxu0 0.0
    %1365 = vmatpush1.msra.mxu0 %v195
    %1366 = vmatprep.subr.mxu0 0.0
    %1367 = vmatpush1.msra.mxu0 %v196
    %1368 = vmatprep.subr.mxu0 0.0
    %1369 = vmatpush1.msra.mxu0 0.0
    %1370 = vmatprep.subr.mxu0 0.0
    %1371 = vmatpush1.msra.mxu0 0.0
    %1372 = vmatprep.subr.mxu0 0.0
    %1373 = vmatpush1.msra.mxu0 0.0
    %1374 = vmatprep.subr.mxu0 0.0
    %1375 = vmatpush1.msra.mxu0 0.0
    %1376 = vmatprep.subr.mxu0 0.0
    %1377 = vmatpush1.msra.mxu0 0.0
    %1378 = vmatprep.subr.mxu0 0.0
    %1379 = vmatpush1.msra.mxu0 0.0
    %1380 = vmatprep.subr.mxu0 0.0
    %1381 = vmatpush1.msra.mxu0 0.0
    %1382 = vmatprep.subr.mxu0 0.0
    %1383 = vmatpush1.msra.mxu0 0.0
    %1384 = vmatprep.subr.mxu0 0.0
    %1385 = vmatpush1.msra.mxu0 0.0
    %1386 = vmatprep.subr.mxu0 0.0
    %1387 = vmatpush1.msra.mxu0 0.0
    %1388 = vmatprep.subr.mxu0 0.0
    %1389 = vmatpush1.msra.mxu0 0.0
    %1390 = vmatprep.subr.mxu0 0.0
    %1391 = vmatpush1.msra.mxu0 0.0
    %1392 = vmatprep.subr.mxu0 0.0
    %1393 = vmatpush1.msra.mxu0 0.0
    %1394 = vmatprep.subr.mxu0 0.0
    %1395 = vmatpush1.msra.mxu0 0.0
    %1396 = vmatprep.subr.mxu0 0.0
    %1397 = vmatpush1.msra.mxu0 0.0
    %1398 = vmatprep.subr.mxu0 0.0
    %1399 = vmatpush1.msra.mxu0 0.0
    %1400 = vmatprep.subr.mxu0 0.0
    %1401 = vmatpush1.msra.mxu0 0.0
    %1402 = vmatprep.subr.mxu0 0.0
    %1403 = vmatpush1.msra.mxu0 0.0
    %1404 = vmatprep.subr.mxu0 0.0
    %1405 = vmatpush1.msra.mxu0 0.0
    %1406 = vmatprep.subr.mxu0 0.0
    %1407 = vmatpush1.msra.mxu0 0.0
    %1408 = vmatprep.subr.mxu0 0.0
    %1409 = vmatpush1.msra.mxu0 0.0
    %1410 = vmatprep.subr.mxu0 0.0
    %1411 = vmatpush1.msra.mxu0 0.0
    %1412 = vmatprep.subr.mxu0 0.0
    %1413 = vmatpush1.msra.mxu0 0.0
    %1414 = vmatprep.subr.mxu0 0.0
    %1415 = vmatpush1.msra.mxu0 0.0
    %1416 = vmatprep.subr.mxu0 0.0
    %1417 = vmatpush1.msra.mxu0 0.0
    %1418 = vmatprep.subr.mxu0 0.0
    %1419 = vmatpush1.msra.mxu0 0.0
    %1420 = vmatprep.subr.mxu0 0.0
    %1421 = vmatpush1.msra.mxu0 0.0
    %1422 = vmatprep.subr.mxu0 0.0
    %1423 = vmatpush1.msra.mxu0 0.0
    %1424 = vmatprep.mubr.f32.mxu0 0.0
    %1425 = vmatmul.mubr.f32.gmra.mrb[0].mxu0 %v1355
    %v1426 = vpop.f32.mrb[0].mxu0
    %v1427 = vadd.f32 0.0, %v1426
    %v1428 = vpop.f32.mrb[0].mxu0
    %1429 = vmatprep.mubr.f32.mxu0 0.0
    %1430 = vmatmul.mubr.f32.gmra.mrb[0].mxu0 %v1358
    %v1431 = vpop.f32.mrb[0].mxu0
    %v1432 = vadd.f32 0.0, %v1431
    %v1433 = vpop.f32.mrb[0].mxu0
    %1434 = vdwg.mxu0
    %v1435 = vlaneseq
    %v1436 = vshrl.u32 %v1435, 7
    %v1437 = vsub.s32 0, %v1436
    %v1438 = vrot.slane %v213, %v1437
    %v1439 = vadd.f32 %v1438, %v1427
    %v1440 = vadd.f32 %v1438, %v1432
    %v1441 = vlaneseq
    %v1442 = vshrl.u32 %v1441, 7
    %v1443 = vsub.s32 0, %v1442
    %v1444 = vrot.slane %v214, %v1443
    %v1445 = vadd.f32 %v1439, %v1444
    %v1446 = vadd.f32 %v1440, %v1444
    %v1447 = vsel %vm1353, %v1445, 0.0
    %1448 = vadd.xlane.f32.xlu0 %v1447
    %v1449 = vpop.xlane.xlu0 %1448
    %v1450 = vsel %vm1353, %v1446, 0.0
    %1451 = vadd.xlane.f32.xlu0 %v1450
    %v1452 = vpop.xlane.xlu0 %1451
    %v1453 = vrcp.pop 32.0
    %v1454 = vmul.f32 %v1449, %v1453
    %v1455 = vmul.f32 %v1452, %v1453
    %v1456 = vsub.f32 %v1445, %v1454
    %v1457 = vsub.f32 %v1446, %v1455
    %v1458 = vmul.f32 %v1456, %v1456
    %v1459 = vmul.f32 %v1457, %v1457
    %v1460 = vsel %vm1353, %v1458, 0.0
    %1461 = vadd.xlane.f32.xlu0 %v1460
    %v1462 = vpop.xlane.xlu0 %1461
    %v1463 = vsel %vm1353, %v1459, 0.0
    %1464 = vadd.xlane.f32.xlu0 %v1463
    %v1465 = vpop.xlane.xlu0 %1464
    %v1466 = vmul.f32 %v1462, %v1453
    %v1467 = vmul.f32 %v1465, %v1453
    %v1468 = vadd.f32 %v1466, 1e-06
    %v1469 = vadd.f32 %v1467, 1e-06
    %v1470 = vrsqrt.pop %v1468
    %v1471 = vrsqrt.pop %v1469
    %v1472 = vmul.f32 %v1456, %v1470
    %v1473 = vmul.f32 %v1457, %v1471
    %v1474 = vlaneseq
    %v1475 = vshrl.u32 %v1474, 7
    %v1476 = vsub.s32 0, %v1475
    %v1477 = vrot.slane %v216, %v1476
    %v1478 = vmul.f32 %v1472, %v1477
    %v1479 = vmul.f32 %v1473, %v1477
    %v1480 = vlaneseq
    %v1481 = vshrl.u32 %v1480, 7
    %v1482 = vsub.s32 0, %v1481
    %v1483 = vrot.slane %v217, %v1482
    %v1484 = vadd.f32 %v1478, %v1483
    %v1485 = vadd.f32 %v1479, %v1483
    %v1486 = vlaneseq
    %v1487 = vshrl.u32 %v1486, 7
    %v1488 = vsub.s32 0, %v1487
    %v1489 = vrot.slane %v174, %v1488
    %v1491 = vsel %vm1353, %v1484, 0
    %v1494 = vsel %vm1353, %v1485, 0
    %1496 = vmatprep.subr.mxu0 0.0
    %1497 = vmatpush1.msra.mxu0 %v166
    %1498 = vmatprep.subr.mxu0 0.0
    %1499 = vmatpush1.msra.mxu0 %v167
    %1500 = vmatprep.subr.mxu0 0.0
    %1501 = vmatpush1.msra.mxu0 %v168
    %1502 = vmatprep.subr.mxu0 0.0
    %1503 = vmatpush1.msra.mxu0 %v169
    %1504 = vmatprep.subr.mxu0 0.0
    %1505 = vmatpush1.msra.mxu0 0.0
    %1506 = vmatprep.subr.mxu0 0.0
    %1507 = vmatpush1.msra.mxu0 0.0
    %1508 = vmatprep.subr.mxu0 0.0
    %1509 = vmatpush1.msra.mxu0 0.0
    %1510 = vmatprep.subr.mxu0 0.0
    %1511 = vmatpush1.msra.mxu0 0.0
    %1512 = vmatprep.subr.mxu0 0.0
    %1513 = vmatpush1.msra.mxu0 0.0
    %1514 = vmatprep.subr.mxu0 0.0
    %1515 = vmatpush1.msra.mxu0 0.0
    %1516 = vmatprep.subr.mxu0 0.0
    %1517 = vmatpush1.msra.mxu0 0.0
    %1518 = vmatprep.subr.mxu0 0.0
    %1519 = vmatpush1.msra.mxu0 0.0
    %1520 = vmatprep.subr.mxu0 0.0
    %1521 = vmatpush1.msra.mxu0 0.0
    %1522 = vmatprep.subr.mxu0 0.0
    %1523 = vmatpush1.msra.mxu0 0.0
    %1524 = vmatprep.subr.mxu0 0.0
    %1525 = vmatpush1.msra.mxu0 0.0
    %1526 = vmatprep.subr.mxu0 0.0
    %1527 = vmatpush1.msra.mxu0 0.0
    %1528 = vmatprep.subr.mxu0 0.0
    %1529 = vmatpush1.msra.mxu0 0.0
    %1530 = vmatprep.subr.mxu0 0.0
    %1531 = vmatpush1.msra.mxu0 0.0
    %1532 = vmatprep.subr.mxu0 0.0
    %1533 = vmatpush1.msra.mxu0 0.0
    %1534 = vmatprep.subr.mxu0 0.0
    %1535 = vmatpush1.msra.mxu0 0.0
    %1536 = vmatprep.subr.mxu0 0.0
    %1537 = vmatpush1.msra.mxu0 0.0
    %1538 = vmatprep.subr.mxu0 0.0
    %1539 = vmatpush1.msra.mxu0 0.0
    %1540 = vmatprep.subr.mxu0 0.0
    %1541 = vmatpush1.msra.mxu0 0.0
    %1542 = vmatprep.subr.mxu0 0.0
    %1543 = vmatpush1.msra.mxu0 0.0
    %1544 = vmatprep.subr.mxu0 0.0
    %1545 = vmatpush1.msra.mxu0 0.0
    %1546 = vmatprep.subr.mxu0 0.0
    %1547 = vmatpush1.msra.mxu0 0.0
    %1548 = vmatprep.subr.mxu0 0.0
    %1549 = vmatpush1.msra.mxu0 0.0
    %1550 = vmatprep.subr.mxu0 0.0
    %1551 = vmatpush1.msra.mxu0 0.0
    %1552 = vmatprep.subr.mxu0 0.0
    %1553 = vmatpush1.msra.mxu0 0.0
    %1554 = vmatprep.subr.mxu0 0.0
    %1555 = vmatpush1.msra.mxu0 0.0
    %1556 = vmatprep.subr.mxu0 0.0
    %1557 = vmatpush1.msra.mxu0 0.0
    %1558 = vmatprep.subr.mxu0 0.0
    %1559 = vmatpush1.msra.mxu0 0.0
    %1560 = vmatprep.mubr.f32.mxu0 0.0
    %1561 = vmatmul.mubr.f32.gmra.mrb[0].mxu0 %v1491
    %v1562 = vpop.f32.mrb[0].mxu0
    %v1563 = vadd.f32 %v1489, %v1562
    %v1564 = vpop.f32.mrb[0].mxu0
    %1565 = vmatprep.mubr.f32.mxu0 0.0
    %1566 = vmatmul.mubr.f32.gmra.mrb[0].mxu0 %v1494
    %v1567 = vpop.f32.mrb[0].mxu0
    %v1568 = vadd.f32 %v1489, %v1567
    %v1569 = vpop.f32.mrb[0].mxu0
    %1570 = vdwg.mxu0
    %v1571 = vmul.f32 %v1563, %v1563
    %v1572 = vmul.f32 %v1568, %v1568
    %v1573 = vmul.f32 %v1563, %v1571
    %v1574 = vmul.f32 %v1568, %v1572
    %v1575 = vmul.f32 %v1573, 0.044715
    %v1576 = vmul.f32 %v1574, 0.044715
    %v1577 = vadd.f32 %v1563, %v1575
    %v1578 = vadd.f32 %v1568, %v1576
    %v1579 = vmul.f32 %v1577, 0.7978846
    %v1580 = vmul.f32 %v1578, 0.7978846
    %v1581 = vtanh.pop %v1579
    %v1582 = vtanh.pop %v1580
    %v1583 = vadd.f32 %v1581, 1.0
    %v1584 = vadd.f32 %v1582, 1.0
    %v1585 = vmul.f32 %v1583, 0.5
    %v1586 = vmul.f32 %v1584, 0.5
    %v1587 = vmul.f32 %v1563, %v1585
    %v1588 = vmul.f32 %v1568, %v1586
    %v1589 = vlaneseq
    %v1590 = vshrl.u32 %v1589, 7
    %v1591 = vsub.s32 0, %v1590
    %v1592 = vrot.slane %v218, %v1591
    %1593 = vmatprep.subr.mxu0 0.0
    %1594 = vmatpush1.msra.mxu0 %v197
    %1595 = vmatprep.subr.mxu0 0.0
    %1596 = vmatpush1.msra.mxu0 %v198
    %1597 = vmatprep.subr.mxu0 0.0
    %1598 = vmatpush1.msra.mxu0 %v199
    %1599 = vmatprep.subr.mxu0 0.0
    %1600 = vmatpush1.msra.mxu0 %v200
    %1601 = vmatprep.subr.mxu0 0.0
    %1602 = vmatpush1.msra.mxu0 %v201
    %1603 = vmatprep.subr.mxu0 0.0
    %1604 = vmatpush1.msra.mxu0 %v202
    %1605 = vmatprep.subr.mxu0 0.0
    %1606 = vmatpush1.msra.mxu0 %v203
    %1607 = vmatprep.subr.mxu0 0.0
    %1608 = vmatpush1.msra.mxu0 %v204
    %1609 = vmatprep.subr.mxu0 0.0
    %1610 = vmatpush1.msra.mxu0 %v205
    %1611 = vmatprep.subr.mxu0 0.0
    %1612 = vmatpush1.msra.mxu0 %v206
    %1613 = vmatprep.subr.mxu0 0.0
    %1614 = vmatpush1.msra.mxu0 %v207
    %1615 = vmatprep.subr.mxu0 0.0
    %1616 = vmatpush1.msra.mxu0 %v208
    %1617 = vmatprep.subr.mxu0 0.0
    %1618 = vmatpush1.msra.mxu0 %v209
    %1619 = vmatprep.subr.mxu0 0.0
    %1620 = vmatpush1.msra.mxu0 %v210
    %1621 = vmatprep.subr.mxu0 0.0
    %1622 = vmatpush1.msra.mxu0 %v211
    %1623 = vmatprep.subr.mxu0 0.0
    %1624 = vmatpush1.msra.mxu0 %v212
    %1625 = vmatprep.subr.mxu0 0.0
    %1626 = vmatpush1.msra.mxu0 0.0
    %1627 = vmatprep.subr.mxu0 0.0
    %1628 = vmatpush1.msra.mxu0 0.0
    %1629 = vmatprep.subr.mxu0 0.0
    %1630 = vmatpush1.msra.mxu0 0.0
    %1631 = vmatprep.subr.mxu0 0.0
    %1632 = vmatpush1.msra.mxu0 0.0
    %1633 = vmatprep.subr.mxu0 0.0
    %1634 = vmatpush1.msra.mxu0 0.0
    %1635 = vmatprep.subr.mxu0 0.0
    %1636 = vmatpush1.msra.mxu0 0.0
    %1637 = vmatprep.subr.mxu0 0.0
    %1638 = vmatpush1.msra.mxu0 0.0
    %1639 = vmatprep.subr.mxu0 0.0
    %1640 = vmatpush1.msra.mxu0 0.0
    %1641 = vmatprep.subr.mxu0 0.0
    %1642 = vmatpush1.msra.mxu0 0.0
    %1643 = vmatprep.subr.mxu0 0.0
    %1644 = vmatpush1.msra.mxu0 0.0
    %1645 = vmatprep.subr.mxu0 0.0
    %1646 = vmatpush1.msra.mxu0 0.0
    %1647 = vmatprep.subr.mxu0 0.0
    %1648 = vmatpush1.msra.mxu0 0.0
    %1649 = vmatprep.subr.mxu0 0.0
    %1650 = vmatpush1.msra.mxu0 0.0
    %1651 = vmatprep.subr.mxu0 0.0
    %1652 = vmatpush1.msra.mxu0 0.0
    %1653 = vmatprep.subr.mxu0 0.0
    %1654 = vmatpush1.msra.mxu0 0.0
    %1655 = vmatprep.subr.mxu0 0.0
    %1656 = vmatpush1.msra.mxu0 0.0
    %1657 = vmatprep.mubr.f32.mxu0 0.0
    %1658 = vmatmul.mubr.f32.gmra.mrb[0].mxu0 %v1587
    %v1659 = vpop.f32.mrb[0].mxu0
    %v1660 = vadd.f32 %v1592, %v1659
    %v1661 = vpop.f32.mrb[0].mxu0
    %1662 = vmatprep.mubr.f32.mxu0 0.0
    %1663 = vmatmul.mubr.f32.gmra.mrb[0].mxu0 %v1588
    %v1664 = vpop.f32.mrb[0].mxu0
    %v1665 = vadd.f32 %v1592, %v1664
    %v1666 = vpop.f32.mrb[0].mxu0
    %1667 = vdwg.mxu0
    %v1668 = vadd.f32 %v1445, %v1660
    %v1669 = vadd.f32 %v1446, %v1665
    %v1670 = vsel %vm1353, %v1668, 0.0
    %1671 = vadd.xlane.f32.xlu0 %v1670
    %v1672 = vpop.xlane.xlu0 %1671
    %v1673 = vsel %vm1353, %v1669, 0.0
    %1674 = vadd.xlane.f32.xlu0 %v1673
    %v1675 = vpop.xlane.xlu0 %1674
    %v1676 = vmul.f32 %v1672, %v1453
    %v1677 = vmul.f32 %v1675, %v1453
    %v1678 = vsub.f32 %v1668, %v1676
    %v1679 = vsub.f32 %v1669, %v1677
    %v1680 = vmul.f32 %v1678, %v1678
    %v1681 = vmul.f32 %v1679, %v1679
    %v1682 = vsel %vm1353, %v1680, 0.0
    %1683 = vadd.xlane.f32.xlu0 %v1682
    %v1684 = vpop.xlane.xlu0 %1683
    %v1685 = vsel %vm1353, %v1681, 0.0
    %1686 = vadd.xlane.f32.xlu0 %v1685
    %v1687 = vpop.xlane.xlu0 %1686
    %v1688 = vmul.f32 %v1684, %v1453
    %v1689 = vmul.f32 %v1687, %v1453
    %v1690 = vadd.f32 %v1688, 1e-06
    %v1691 = vadd.f32 %v1689, 1e-06
    %v1692 = vrsqrt.pop %v1690
    %v1693 = vrsqrt.pop %v1691
    %v1694 = vmul.f32 %v1678, %v1692
    %v1695 = vmul.f32 %v1679, %v1693
    %v1696 = vlaneseq
    %v1697 = vshrl.u32 %v1696, 7
    %v1698 = vsub.s32 0, %v1697
    %v1699 = vrot.slane %v219, %v1698
    %v1700 = vmul.f32 %v1694, %v1699
    %v1701 = vmul.f32 %v1695, %v1699
    %v1702 = vlaneseq
    %v1703 = vshrl.u32 %v1702, 7
    %v1704 = vsub.s32 0, %v1703
    %v1705 = vrot.slane %v220, %v1704
    %v1706 = vadd.f32 %v1700, %v1705
    %v1707 = vadd.f32 %v1701, %v1705
    %1708 = vst.msk [vmem:[#allocation5] sm:$0xff] %vm1353, %v1706
    %1709 = vst.msk [vmem:[#allocation5 + $0x8] sm:$0xff] %vm1353, %v1707
    // Predicated region
    $region26: #{tpu_custom_call.1} parent=1 // pred_check
      _
    $region27: #{tpu_custom_call.1} parent=1 // pred_check_branch
      %1711 = sbr.rel (0) target = $region29
    $region28: #{tpu_custom_call.1} parent=1 // pred_region
      %s1713 = ssub.s32 256, 256
      %1714 = vsyncadd [#allocation4], %s1713
      %s1715 = sshll.u32 [#allocation5], 4
      %s1716 = int_to_ptr.vmem [resolvable:$true] %s1715
      %1721 = dma.vmem_to_hbm [thread:$0]  %s1716, 256, %s5, [#allocation4], 128, 128, 8
    $region29: #{tpu_custom_call.1} parent=1 // pred_fallthru
      _
    // Predicated region
    $region30: #{tpu_custom_call.1} parent=1 // pred_check
      _
    $region31: #{tpu_custom_call.1} parent=1 // pred_check_branch
      %1723 = sbr.rel (0) target = $region33
    $region32: #{tpu_custom_call.1} parent=1 // pred_region
      %1724 = dma.done [#allocation4], 256
    $region33: #{tpu_custom_call.1} parent=1 // pred_fallthru
      _
    %1725 = vsyncpa [#allocation3], 1
    %1726 = vsyncpa [#allocation4], 1

</llo_original>
